<compile_context>
chip_gen: v5e
topology: v5e:2x2
jax: 0.10.0
libtpu: 0.0.40
codegen_flags: <defaults>
</compile_context>

<pallas_src>
import functools

import numpy as np
import jax
import jax.numpy as jnp
from jax.experimental import pallas as pl
from jax.experimental.pallas import tpu as pltpu


# ----------------------------------------------------------------------------
# Vocabulary construction (mirrors ShapeEncoder.__init__ exactly)
# ----------------------------------------------------------------------------
def build_vocab(num_classes=10, max_shape=(64, 64, 11, 11)):
    assert max_shape[2] == max_shape[3], max_shape
    ch_steps = (2 ** 3, 2 ** 6, 2 ** 12, 2 ** 13)
    channels = np.unique(
        [1, 3, num_classes]
        + list(range(ch_steps[0], ch_steps[1], 2 ** 3))
        + list(range(ch_steps[1], ch_steps[2], 2 ** 4))
        + list(range(ch_steps[2], ch_steps[3] + 1, 2 ** 5))
    )
    spatial = np.unique(list(range(1, max(12, max_shape[3]), 2)) + [14, 16])
    return channels, spatial


def _round_up(a, b):
    return (a + b - 1) // b * b


# ----------------------------------------------------------------------------
# Pallas kernel
# ----------------------------------------------------------------------------
def shape_encoder_kernel(ind_ref, x_ref, thi_ref, tlo_ref, o_ref, *,
                         vc_pad, vs_pad):
    """ind_ref: (T, 4) int32 (clamped, per-block local indices),
    x_ref/o_ref: (T, H) f32,
    thi_ref/tlo_ref: (2*vc_pad + 2*vs_pad, H) bf16 block-diagonal tables."""
    t = x_ref.shape[0]
    ind = ind_ref[...]                                        # (T, 4)

    # Per-column one-hot against that column's OWN 128-aligned vocab block.
    # Blocks are disjoint, so no adds are needed -- just concatenate.
    iota_c = jax.lax.broadcasted_iota(jnp.int32, (t, vc_pad), 1)
    iota_s = jax.lax.broadcasted_iota(jnp.int32, (t, vs_pad), 1)
    h0 = (ind[:, 0:1] == iota_c).astype(jnp.bfloat16)
    h1 = (ind[:, 1:2] == iota_c).astype(jnp.bfloat16)
    h2 = (ind[:, 2:3] == iota_s).astype(jnp.bfloat16)
    h3 = (ind[:, 3:4] == iota_s).astype(jnp.bfloat16)
    hot = jnp.concatenate([h0, h1, h2, h3], axis=1)           # (T, Vtot) bf16

    # Block-diagonal table: one (pair of) bf16 MXU matmuls yields all four
    # H/4-wide embedding slabs at once.  hi/lo split keeps the result exact
    # to ~2^-16 relative (hot entries are exactly 0/1, f32 accumulation).
    emb = jnp.dot(hot, thi_ref[...], preferred_element_type=jnp.float32)
    emb = emb + jnp.dot(hot, tlo_ref[...], preferred_element_type=jnp.float32)

    # Fused residual add; single lane-dense full-width store.
    o_ref[...] = (x_ref[...] + emb).astype(o_ref.dtype)


# ----------------------------------------------------------------------------
# Table construction (hoisted: built ONCE per parameter set)
# ----------------------------------------------------------------------------
def build_combined_tables(emb_channel, emb_spatial):
    """Block-diagonal combined table, split into hi/lo bf16 parts.

    Rows [0, Vc)                         x cols [0,    H/4)  : channel table
    Rows [Vc_pad, Vc_pad+Vc)             x cols [H/4,  H/2)  : channel table
    Rows [2*Vc_pad, 2*Vc_pad+Vs)         x cols [H/2, 3H/4)  : spatial table
    Rows [2*Vc_pad+Vs_pad, ... +Vs)      x cols [3H/4,   H)  : spatial table
    """
    vc, h4 = emb_channel.shape
    vs, h4s = emb_spatial.shape
    assert h4 == h4s, (h4, h4s)
    h = 4 * h4
    vc_pad = _round_up(vc, 128)
    vs_pad = _round_up(vs, 128)
    vtot_pad = 2 * vc_pad + 2 * vs_pad

    ec = emb_channel.astype(jnp.float32)
    es = emb_spatial.astype(jnp.float32)
    table = jnp.zeros((vtot_pad, h), dtype=jnp.float32)
    table = table.at[0:vc, 0 * h4:1 * h4].set(ec)
    table = table.at[vc_pad:vc_pad + vc, 1 * h4:2 * h4].set(ec)
    table = table.at[2 * vc_pad:2 * vc_pad + vs, 2 * h4:3 * h4].set(es)
    table = table.at[2 * vc_pad + vs_pad:2 * vc_pad + vs_pad + vs,
                     3 * h4:4 * h4].set(es)

    table_hi = table.astype(jnp.bfloat16)
    table_lo = (table - table_hi.astype(jnp.float32)).astype(jnp.bfloat16)
    return table_hi, table_lo, vc_pad, vs_pad


# ----------------------------------------------------------------------------
# Forward wrapper
# ----------------------------------------------------------------------------
def _shape_encoder_forward(x, shape_ind, table_hi, table_lo, *,
                           n_channel, n_spatial, vc_pad, vs_pad, tile_bn):
    B, N, H = x.shape
    BN = B * N
    vtot_pad = table_hi.shape[0]
    assert table_hi.shape[1] == H

    x2 = x.reshape(BN, H)
    ind2 = shape_ind.reshape(BN, 4).astype(jnp.int32)
    # Gather-clamp semantics (torch nn.Embedding would raise on OOB indices).
    ind2 = jnp.concatenate(
        [jnp.clip(ind2[:, 0:2], 0, n_channel - 1),
         jnp.clip(ind2[:, 2:4], 0, n_spatial - 1)], axis=1)

    # Row-tile sizing: multiple of 8; keep >= 2 grid steps when possible so
    # v7x's two TensorCores both get work on the "parallel" axis.  The
    # ragged last block (when tile does not divide BN) is masked by Pallas,
    # so x is never host-padded.
    tile = max(8, min(_round_up(tile_bn, 8), _round_up(BN, 8)))
    if BN > 8 and pl.cdiv(BN, tile) < 2:
        tile = _round_up(pl.cdiv(BN, 2), 8)
    grid = (pl.cdiv(BN, tile),)

    # VMEM budget: double-buffered x/out/ind tiles + resident hi/lo tables +
    # bf16 multi-hot + iota/matmul temporaries.  Clamp to 48 MiB (v7x-safe;
    # v5e/v6e have 128 MiB so this is conservative everywhere).
    vmem_bytes = (
        2 * 2 * tile * H * 4             # x + out tiles, double-buffered
        + 2 * tile * 128 * 4             # index tile (lane-padded), dbl-buf
        + 2 * 2 * vtot_pad * H * 2       # hi/lo tables (bf16), dbl-buf
        + tile * vtot_pad * 2            # multi-hot intermediate (bf16)
        + tile * (vc_pad + vs_pad) * 4   # iotas
        + 2 * tile * H * 4               # f32 matmul results
    )
    vmem_limit = int(min(48 << 20, max(32 << 20, 2 * vmem_bytes)))

    kernel = functools.partial(shape_encoder_kernel,
                               vc_pad=vc_pad, vs_pad=vs_pad)

    out = pl.pallas_call(
        kernel,
        out_shape=jax.ShapeDtypeStruct((BN, H), x.dtype),
        grid=grid,
        in_specs=[
            pl.BlockSpec((tile, 4), lambda i: (i, 0)),
            pl.BlockSpec((tile, H), lambda i: (i, 0)),
            pl.BlockSpec((vtot_pad, H), lambda i: (0, 0)),   # resident hi table
            pl.BlockSpec((vtot_pad, H), lambda i: (0, 0)),   # resident lo table
        ],
        out_specs=pl.BlockSpec((tile, H), lambda i: (i, 0)),
        input_output_aliases={1: 0},     # write result into x2's buffer
        compiler_params=pltpu.CompilerParams(
            dimension_semantics=("parallel",),
            vmem_limit_bytes=vmem_limit,
        ),
    )(ind2, x2, table_hi, table_lo)

    return out.reshape(B, N, H)


def make_shape_encoder(emb_channel, emb_spatial, tile_bn=1024):
    """Builds the combined block-diagonal hi/lo tables ONCE (hoisted out of
    the per-call path) and returns a jitted forward(x, shape_ind)."""
    table_hi, table_lo, vc_pad, vs_pad = build_combined_tables(
        emb_channel, emb_spatial)
    n_channel = int(emb_channel.shape[0])
    n_spatial = int(emb_spatial.shape[0])

    @jax.jit
    def forward(x, shape_ind):
        return _shape_encoder_forward(
            x, shape_ind, table_hi, table_lo,
            n_channel=n_channel, n_spatial=n_spatial,
            vc_pad=vc_pad, vs_pad=vs_pad, tile_bn=tile_bn)

    return forward


# ----------------------------------------------------------------------------
# Reference (pure JAX) for verification
# ----------------------------------------------------------------------------
def shape_encoder_ref(x, shape_ind, emb_channel, emb_spatial):
    e0 = emb_channel[shape_ind[:, :, 0]]
    e1 = emb_channel[shape_ind[:, :, 1]]
    e2 = emb_spatial[shape_ind[:, :, 2]]
    e3 = emb_spatial[shape_ind[:, :, 3]]
    return x + jnp.concatenate([e0, e1, e2, e3], axis=2)


if __name__ == "__main__":
    # Small shapes: batch=2, nodes=8, hid=32 (hid//4 = 8 per embedding).
    B, N, HID = 2, 8, 32
    num_classes = 10
    channels, spatial = build_vocab(num_classes=num_classes)
    n_ch, n_s = len(channels), len(spatial)          # ~391 and 8

    key = jax.random.PRNGKey(0)
    k_x, k_ec, k_es, k_ic, k_is = jax.random.split(key, 5)

    # Deterministic "weights" (torch.nn.Embedding default init: N(0, 1)).
    emb_channel = jax.random.normal(k_ec, (n_ch + 1, HID // 4), dtype=jnp.float32)
    emb_spatial = jax.random.normal(k_es, (n_s + 1, HID // 4), dtype=jnp.float32)

    # Inputs.
    x = jax.random.normal(k_x, (B, N, HID), dtype=jnp.float32)
    ind_c = jax.random.randint(k_ic, (B, N, 2), 0, n_ch + 1, dtype=jnp.int32)
    ind_s = jax.random.randint(k_is, (B, N, 2), 0, n_s + 1, dtype=jnp.int32)
    shape_ind = jnp.concatenate([ind_c, ind_s], axis=-1)      # (B, N, 4)

    forward = make_shape_encoder(emb_channel, emb_spatial)
    out = jax.block_until_ready(forward(x, shape_ind))

    ref = shape_encoder_ref(x, shape_ind, emb_channel, emb_spatial)
    # hi/lo bf16 table split reconstructs the f32 embeddings to ~2^-16
    # relative error; tolerance sits well above that bound and far below any
    # wrong-selection error (~O(1)).
    np.testing.assert_allclose(np.asarray(out), np.asarray(ref),
                               rtol=1e-4, atol=2e-4)
    print("KERNEL_OK")
</pallas_src>

<mosaic_0001>
module attributes {stable_mosaic.version = 11 : i64} {
  func.func @shape_encoder_kernel(%arg0: i32, %arg1: memref<8x4xi32, #tpu.memory_space<vmem>>, %arg2: memref<8x32xf32, #tpu.memory_space<vmem>>, %arg3: memref<1280x32xbf16, #tpu.memory_space<vmem>>, %arg4: memref<1280x32xbf16, #tpu.memory_space<vmem>>, %arg5: memref<8x32xf32, #tpu.memory_space<vmem>>) attributes {dimension_semantics = [#tpu.dimension_semantics<parallel>], iteration_bounds = array<i64: 2>, scalar_prefetch = 0 : i64, scratch_operands = 0 : i64, tpu.core_type = #tpu.core_type<tc>, window_params = [{transform_indices = @transform_0, window_bounds = array<i64: 8, 4>}, {transform_indices = @transform_1, window_bounds = array<i64: 8, 32>}, {pipeline_mode = #tpu.pipeline_mode<synchronous>, transform_indices = @transform_2, window_bounds = array<i64: 1280, 32>}, {pipeline_mode = #tpu.pipeline_mode<synchronous>, transform_indices = @transform_3, window_bounds = array<i64: 1280, 32>}, {transform_indices = @transform_4, window_bounds = array<i64: 8, 32>}]} {
    %c0 = arith.constant 0 : index
    %c0_0 = arith.constant 0 : index
    %0 = vector.load %arg1[%c0, %c0_0] : memref<8x4xi32, #tpu.memory_space<vmem>>, vector<8x4xi32>
    %1 = tpu.iota {dimensions = array<i32: 1>} : vector<8x512xi32>
    %2 = tpu.iota {dimensions = array<i32: 1>} : vector<8x128xi32>
    %3 = vector.extract_strided_slice %0 {offsets = [0, 0], sizes = [8, 1], strides = [1, 1]} : vector<8x4xi32> to vector<8x1xi32>
    %4 = vector.broadcast %3 : vector<8x1xi32> to vector<8x512xi32>
    %5 = arith.cmpi eq, %4, %1 : vector<8x512xi32>
    %6 = arith.extui %5 : vector<8x512xi1> to vector<8x512xi32>
    %7 = arith.sitofp %6 : vector<8x512xi32> to vector<8x512xf32>
    %8 = arith.truncf %7 : vector<8x512xf32> to vector<8x512xbf16>
    %9 = vector.extract_strided_slice %0 {offsets = [0, 1], sizes = [8, 1], strides = [1, 1]} : vector<8x4xi32> to vector<8x1xi32>
    %10 = vector.broadcast %9 : vector<8x1xi32> to vector<8x512xi32>
    %11 = arith.cmpi eq, %10, %1 : vector<8x512xi32>
    %12 = arith.extui %11 : vector<8x512xi1> to vector<8x512xi32>
    %13 = arith.sitofp %12 : vector<8x512xi32> to vector<8x512xf32>
    %14 = arith.truncf %13 : vector<8x512xf32> to vector<8x512xbf16>
    %15 = vector.extract_strided_slice %0 {offsets = [0, 2], sizes = [8, 1], strides = [1, 1]} : vector<8x4xi32> to vector<8x1xi32>
    %16 = vector.broadcast %15 : vector<8x1xi32> to vector<8x128xi32>
    %17 = arith.cmpi eq, %16, %2 : vector<8x128xi32>
    %18 = arith.extui %17 : vector<8x128xi1> to vector<8x128xi32>
    %19 = arith.sitofp %18 : vector<8x128xi32> to vector<8x128xf32>
    %20 = arith.truncf %19 : vector<8x128xf32> to vector<8x128xbf16>
    %21 = vector.extract_strided_slice %0 {offsets = [0, 3], sizes = [8, 1], strides = [1, 1]} : vector<8x4xi32> to vector<8x1xi32>
    %22 = vector.broadcast %21 : vector<8x1xi32> to vector<8x128xi32>
    %23 = arith.cmpi eq, %22, %2 : vector<8x128xi32>
    %24 = arith.extui %23 : vector<8x128xi1> to vector<8x128xi32>
    %25 = arith.sitofp %24 : vector<8x128xi32> to vector<8x128xf32>
    %26 = arith.truncf %25 : vector<8x128xf32> to vector<8x128xbf16>
    %27 = tpu.concatenate %8, %14, %20, %26 in 1 : vector<8x512xbf16>, vector<8x512xbf16>, vector<8x128xbf16>, vector<8x128xbf16> -> vector<8x1280xbf16>
    %c0_1 = arith.constant 0 : index
    %c0_2 = arith.constant 0 : index
    %28 = vector.load %arg3[%c0_1, %c0_2] : memref<1280x32xbf16, #tpu.memory_space<vmem>>, vector<1280x32xbf16>
    %cst = arith.constant dense<0.000000e+00> : vector<8x32xf32>
    %29 = tpu.matmul %27, %28, %cst {dimension_numbers = #tpu.dot_dimension_numbers<[1], [0], [0], [1], [0, 0, 1, 1], [], []>} : vector<8x1280xbf16>, vector<1280x32xbf16>, vector<8x32xf32> -> vector<8x32xf32>
    %c0_3 = arith.constant 0 : index
    %c0_4 = arith.constant 0 : index
    %30 = vector.load %arg4[%c0_3, %c0_4] : memref<1280x32xbf16, #tpu.memory_space<vmem>>, vector<1280x32xbf16>
    %cst_5 = arith.constant dense<0.000000e+00> : vector<8x32xf32>
    %31 = tpu.matmul %27, %30, %cst_5 {dimension_numbers = #tpu.dot_dimension_numbers<[1], [0], [0], [1], [0, 0, 1, 1], [], []>} : vector<8x1280xbf16>, vector<1280x32xbf16>, vector<8x32xf32> -> vector<8x32xf32>
    %32 = arith.addf %29, %31 : vector<8x32xf32>
    %c0_6 = arith.constant 0 : index
    %c0_7 = arith.constant 0 : index
    %33 = vector.load %arg2[%c0_6, %c0_7] : memref<8x32xf32, #tpu.memory_space<vmem>>, vector<8x32xf32>
    %34 = arith.addf %33, %32 : vector<8x32xf32>
    %c0_8 = arith.constant 0 : index
    %c0_9 = arith.constant 0 : index
    %35 = vector.load %arg5[%c0_8, %c0_9] : memref<8x32xf32, #tpu.memory_space<vmem>>, vector<8x32xf32>
    tpu.vector_store %arg5[%c0_8, %c0_9], %34 {strides = array<i32>} : memref<8x32xf32, #tpu.memory_space<vmem>>, vector<8x32xf32>,
    return
  }
  func.func @transform_0(%arg0: i32) -> (i32, i32) {
    %c0_i32 = arith.constant 0 : i32
    %c0_i32_0 = arith.constant 0 : i32
    return %arg0, %c0_i32 : i32, i32
  }
  func.func @transform_1(%arg0: i32) -> (i32, i32) {
    %c0_i32 = arith.constant 0 : i32
    %c0_i32_0 = arith.constant 0 : i32
    return %arg0, %c0_i32 : i32, i32
  }
  func.func @transform_2(%arg0: i32) -> (i32, i32) {
    %c0_i32 = arith.constant 0 : i32
    %c0_i32_0 = arith.constant 0 : i32
    %c0_i32_1 = arith.constant 0 : i32
    return %c0_i32, %c0_i32_0 : i32, i32
  }
  func.func @transform_3(%arg0: i32) -> (i32, i32) {
    %c0_i32 = arith.constant 0 : i32
    %c0_i32_0 = arith.constant 0 : i32
    %c0_i32_1 = arith.constant 0 : i32
    return %c0_i32, %c0_i32_0 : i32, i32
  }
  func.func @transform_4(%arg0: i32) -> (i32, i32) {
    %c0_i32 = arith.constant 0 : i32
    %c0_i32_0 = arith.constant 0 : i32
    return %arg0, %c0_i32 : i32, i32
  }
}

</mosaic_0001>

<llo_original>
// kernel: forward.1
$region0: #{forward.1}
  #allocation0 [shape = 'u32[]', space=smem, size = 0x4, offset = 0x4, fixed_abs, tag = 'smem constant byte address 0x4 - core index']
  #allocation1 [shape = 'u32[72,128]{1,0:T(1,128)}', space=vmem, size = 0x9000, scoped, tag = 'internal scratch']
  %s0 = inlined_call_operand.vmem [shape: s32[16,4], index: 0, kind: input, shape index: {}]
  %s1 = inlined_call_operand.vmem [shape: f32[16,32], index: 1, kind: input, shape index: {}, may-alias: {1,4}]
  %s2 = inlined_call_operand.hbm [shape: bf16[1280,32], index: 2, kind: input, shape index: {}]
  %s3 = inlined_call_operand.hbm [shape: bf16[1280,32], index: 3, kind: input, shape index: {}]
  %s4 = inlined_call_operand.vmem [shape: f32[16,32], index: 4, kind: output, shape index: {}, may-alias: {1,4}]
  %s5 = sld [smem:[#allocation0]]
  $region57: #{forward.1} parent=0
    _
  %s7 = ssub.s32 1, %s5
  %s8 = scalar_select 0, %s7, %s5
  $region1: #{forward.1} parent=0
    #allocation2 [shape = 'u8[327680]{0}', space=vmem, size = 0x50000, scoped, tag = 'input window, operand 2, single buffered']
    #allocation3 [shape = 's32[2]{0}', space=sflag, size = 0x8, scoped, tag = 'scoped memory for forward.1']
    #allocation4 [shape = 'u8[327680]{0}', space=vmem, size = 0x50000, scoped, tag = 'input window, operand 3, single buffered']
    #allocation5 [shape = 's32[1]{0}', space=sflag, size = 0x4, scoped, tag = 'scoped memory for forward.1']
    %9 = vsyncpa [#allocation3], 0
    %10 = vsyncpa [#allocation5], 0
    loop: start=0, step=1, limit=4
    $region2: #{forward.1} parent=1 // loop_pre_header
      _
    $region3: #{forward.1} parent=1 // loop_header
      %s12 = sphi 0, %s16
      %p13 = scmp.ge.s32.totalorder %s12, 4
      %s22 = sphi 0, %s24
      %s25 = sphi 0, %s22
      %s26 = sphi 0, %s25
      %s42 = sphi 0, %s26
      %s48 = sphi 0, %s50
      %s51 = sphi 0, %s48
      %s52 = sphi 0, %s51
      %s68 = sphi 0, %s52
      %s72 = sphi 0, %s72
      %s74 = sphi 0, %s72
      %s75 = sphi 0, %s74
      %s89 = sphi 0, %s75
      %s93 = sphi 0, %s93
      %s95 = sphi 0, %s93
      %s96 = sphi 0, %s95
      %s110 = sphi 0, %s96
      %s116 = sphi 0, %s118
      %s119 = sphi 0, %s116
      %s120 = sphi 0, %s119
      %s136 = sphi 0, %s120
    $region4: #{forward.1} parent=1 // loop_header_branch
      %15 = sbr.rel (%p13) target = $region8
    $region5: #{forward.1} parent=1 // loop_body
      %s17 = ssub.s32 %s12, 1
      %s18 = ssub.s32 %s12, 2
      %s19 = sadd.s32 %s12, 1
      %s20 = ssub.s32 %s12, %s19
      %p21 = scmp.eq.s32.totalorder %s20, 0
      %s23 = sadd.s32 %s22, 1
      %s24 = scalar_select %p21, %s22, %s23
      %p27 = pneg %p21
      %p28 = scmp.eq.s32.totalorder %s12, 1
      %p29 = por %p27, %p28
      %p30 = scmp.ne.s32.totalorder %s22, %s25
      %p31 = scmp.eq.s32.totalorder %s12, 0
      %p32 = por %p30, %p31
      %p33 = scmp.ne.s32.totalorder %s22, %s25
      %p34 = scmp.eq.s32.totalorder %s17, 1
      %p35 = por %p33, %p34
      %p36 = scmp.ne.s32.totalorder %s25, %s26
      %p37 = scmp.eq.s32.totalorder %s17, 0
      %p38 = por %p36, %p37
      %p39 = scmp.ne.s32.totalorder %s25, %s26
      %p40 = scmp.eq.s32.totalorder %s18, 1
      %p41 = por %p39, %p40
      %p43 = scmp.ne.s32.totalorder %s26, %s42
      %p44 = scmp.eq.s32.totalorder %s18, 0
      %p45 = por %p43, %p44
      %s46 = ssub.s32 %s12, %s19
      %p47 = scmp.eq.s32.totalorder %s46, 0
      %s49 = sadd.s32 %s48, 1
      %s50 = scalar_select %p47, %s48, %s49
      %p53 = pneg %p47
      %p54 = scmp.eq.s32.totalorder %s12, 1
      %p55 = por %p53, %p54
      %p56 = scmp.ne.s32.totalorder %s48, %s51
      %p57 = scmp.eq.s32.totalorder %s12, 0
      %p58 = por %p56, %p57
      %p59 = scmp.ne.s32.totalorder %s48, %s51
      %p60 = scmp.eq.s32.totalorder %s17, 1
      %p61 = por %p59, %p60
      %p62 = scmp.ne.s32.totalorder %s51, %s52
      %p63 = scmp.eq.s32.totalorder %s17, 0
      %p64 = por %p62, %p63
      %p65 = scmp.ne.s32.totalorder %s51, %s52
      %p66 = scmp.eq.s32.totalorder %s18, 1
      %p67 = por %p65, %p66
      %p69 = scmp.ne.s32.totalorder %s52, %s68
      %p70 = scmp.eq.s32.totalorder %s18, 0
      %p71 = por %p69, %p70
      %s73 = sadd.s32 %s72, 1
      %p76 = scmp.eq.s32.totalorder %s12, 1
      %p77 = scmp.ne.s32.totalorder %s72, %s74
      %p78 = scmp.eq.s32.totalorder %s12, 0
      %p79 = por %p77, %p78
      %p80 = scmp.ne.s32.totalorder %s72, %s74
      %p81 = scmp.eq.s32.totalorder %s17, 1
      %p82 = por %p80, %p81
      %p83 = scmp.ne.s32.totalorder %s74, %s75
      %p84 = scmp.eq.s32.totalorder %s17, 0
      %p85 = por %p83, %p84
      %p86 = scmp.ne.s32.totalorder %s74, %s75
      %p87 = scmp.eq.s32.totalorder %s18, 1
      %p88 = por %p86, %p87
      %p90 = scmp.ne.s32.totalorder %s75, %s89
      %p91 = scmp.eq.s32.totalorder %s18, 0
      %p92 = por %p90, %p91
      %s94 = sadd.s32 %s93, 1
      %p97 = scmp.eq.s32.totalorder %s12, 1
      %p98 = scmp.ne.s32.totalorder %s93, %s95
      %p99 = scmp.eq.s32.totalorder %s12, 0
      %p100 = por %p98, %p99
      %p101 = scmp.ne.s32.totalorder %s93, %s95
      %p102 = scmp.eq.s32.totalorder %s17, 1
      %p103 = por %p101, %p102
      %p104 = scmp.ne.s32.totalorder %s95, %s96
      %p105 = scmp.eq.s32.totalorder %s17, 0
      %p106 = por %p104, %p105
      %p107 = scmp.ne.s32.totalorder %s95, %s96
      %p108 = scmp.eq.s32.totalorder %s18, 1
      %p109 = por %p107, %p108
      %p111 = scmp.ne.s32.totalorder %s96, %s110
      %p112 = scmp.eq.s32.totalorder %s18, 0
      %p113 = por %p111, %p112
      %s114 = ssub.s32 %s12, %s19
      %p115 = scmp.eq.s32.totalorder %s114, 0
      %s117 = sadd.s32 %s116, 1
      %s118 = scalar_select %p115, %s116, %s117
      %p121 = pneg %p115
      %p122 = scmp.eq.s32.totalorder %s12, 1
      %p123 = por %p121, %p122
      %p124 = scmp.ne.s32.totalorder %s116, %s119
      %p125 = scmp.eq.s32.totalorder %s12, 0
      %p126 = por %p124, %p125
      %p127 = scmp.ne.s32.totalorder %s116, %s119
      %p128 = scmp.eq.s32.totalorder %s17, 1
      %p129 = por %p127, %p128
      %p130 = scmp.ne.s32.totalorder %s119, %s120
      %p131 = scmp.eq.s32.totalorder %s17, 0
      %p132 = por %p130, %p131
      %p133 = scmp.ne.s32.totalorder %s119, %s120
      %p134 = scmp.eq.s32.totalorder %s18, 1
      %p135 = por %p133, %p134
      %p137 = scmp.ne.s32.totalorder %s120, %s136
      %p138 = scmp.eq.s32.totalorder %s18, 0
      %p139 = por %p137, %p138
      %p140 = scmp.le.s32.totalorder 1, %s12
      %p141 = scmp.lt.s32.totalorder %s12, 3
      %p142 = pnand %p140, %p141
      %p143 = pneg %p142
      // Predicated region
      $region9: #{forward.1} parent=5 // pred_check
        _
      $region10: #{forward.1} parent=5 // pred_check_branch
        %145 = sbr.rel (%p142) target = $region12
      $region11: #{forward.1} parent=5 // pred_region
        %s146 = ssub.s32 %s12, 1
        // Predicated region
        $region13: #{forward.1} parent=11 // pred_check
          %p147 = pneg %p85
        $region14: #{forward.1} parent=11 // pred_check_branch
          %149 = sbr.rel (%p147) target = $region16
        $region15: #{forward.1} parent=11 // pred_region
          %151 = vsyncadd [#allocation3], 0
          %s152 = sshll.u32 %s2, 4
          %s153 = int_to_ptr.hbm [resolvable:$true] %s152
          %s154 = sshll.u32 [#allocation2], 4
          %s155 = int_to_ptr.vmem [resolvable:$true] %s154
          %160 = dma.hbm_to_vmem [thread:$0]  %s153, 10240, %s155, [#allocation3], 64, 64, 4
        $region16: #{forward.1} parent=11 // pred_fallthru
          _
        // Predicated region
        $region17: #{forward.1} parent=11 // pred_check
          %p161 = pneg %p106
        $region18: #{forward.1} parent=11 // pred_check_branch
          %163 = sbr.rel (%p161) target = $region20
        $region19: #{forward.1} parent=11 // pred_region
          %165 = vsyncadd [#allocation5], 0
          %s166 = sshll.u32 %s3, 4
          %s167 = int_to_ptr.hbm [resolvable:$true] %s166
          %s168 = sshll.u32 [#allocation4], 4
          %s169 = int_to_ptr.vmem [resolvable:$true] %s168
          %174 = dma.hbm_to_vmem [thread:$0]  %s167, 10240, %s169, [#allocation5], 64, 64, 4
        $region20: #{forward.1} parent=11 // pred_fallthru
          _
      $region12: #{forward.1} parent=5 // pred_fallthru
        _
      %p175 = scmp.lt.s32.totalorder %s12, 2
      // Predicated region
      $region21: #{forward.1} parent=5 // pred_check
        %p176 = pneg %p175
      $region22: #{forward.1} parent=5 // pred_check_branch
        %178 = sbr.rel (%p176) target = $region24
      $region23: #{forward.1} parent=5 // pred_region
        // Predicated region
        $region25: #{forward.1} parent=23 // pred_check
          %p179 = pneg %p32
        $region26: #{forward.1} parent=23 // pred_check_branch
          %181 = sbr.rel (%p179) target = $region28
        $region27: #{forward.1} parent=23 // pred_region
          %p182 = scmp.lt.s32.totalorder %s12, 1
          %s183 = scalar_select %p182, %s12, 1
          %s184 = smul.addr %s183, 8
          %s185 = scalar_lea.vmem %s0, %s184
        $region28: #{forward.1} parent=23 // pred_fallthru
          _
        // Predicated region
        $region29: #{forward.1} parent=23 // pred_check
          %p186 = pneg %p58
        $region30: #{forward.1} parent=23 // pred_check_branch
          %188 = sbr.rel (%p186) target = $region32
        $region31: #{forward.1} parent=23 // pred_region
          %p189 = scmp.lt.s32.totalorder %s12, 1
          %s190 = scalar_select %p189, %s12, 1
          %s191 = smul.addr %s190, 8
          %s192 = scalar_lea.vmem %s1, %s191
        $region32: #{forward.1} parent=23 // pred_fallthru
          _
      $region24: #{forward.1} parent=5 // pred_fallthru
        _
      %p193 = scmp.le.s32.totalorder 1, %s12
      %p194 = scmp.lt.s32.totalorder %s12, 3
      %p195 = pnand %p193, %p194
      %p196 = pneg %p195
      // Predicated region
      $region33: #{forward.1} parent=5 // pred_check
        _
      $region34: #{forward.1} parent=5 // pred_check_branch
        %198 = sbr.rel (%p195) target = $region36
      $region35: #{forward.1} parent=5 // pred_region
        %s199 = ssub.s32 %s12, 1
        // Predicated region
        $region37: #{forward.1} parent=35 // pred_check
          %p200 = pneg %p85
        $region38: #{forward.1} parent=35 // pred_check_branch
          %202 = sbr.rel (%p200) target = $region40
        $region39: #{forward.1} parent=35 // pred_region
          %204 = dma.done [#allocation3], 10240
        $region40: #{forward.1} parent=35 // pred_fallthru
          _
        // Predicated region
        $region41: #{forward.1} parent=35 // pred_check
          %p205 = pneg %p106
        $region42: #{forward.1} parent=35 // pred_check_branch
          %207 = sbr.rel (%p205) target = $region44
        $region43: #{forward.1} parent=35 // pred_region
          %209 = dma.done [#allocation5], 10240
        $region44: #{forward.1} parent=35 // pred_fallthru
          _
        %p210 = scmp.lt.s32.totalorder %s17, 1
        %s211 = scalar_select %p210, %s17, 1
        %s212 = smul.addr %s211, 8
        %s213 = scalar_lea.vmem %s0, %s212
        %p214 = pneg %p38
        %p215 = pneg %p35
        %p216 = scmp.lt.s32.totalorder %s17, 1
        %s217 = scalar_select %p216, %s17, 1
        %s218 = smul.addr %s217, 8
        %s219 = scalar_lea.vmem %s1, %s218
        %p220 = pneg %p64
        %p221 = pneg %p61
        %p222 = pneg %p85
        %p223 = pneg %p82
        %p224 = pneg %p106
        %p225 = pneg %p103
        %p226 = pneg %p132
        %p227 = pneg %p129
        %p228 = scmp.lt.s32.totalorder %s17, 1
        %s229 = scalar_select %p228, %s17, 1
        %s230 = smul.addr %s229, 8
        %s231 = scalar_lea.vmem %s4, %s230
        %p232 = scmp.lt.s32.totalorder %s17, 1
        %s233 = scalar_select %p232, %s17, 1
        %s234 = smul.addr %s233, 8
        %s235 = scalar_lea.vmem %s0, %s234
        %p236 = scmp.lt.s32.totalorder %s17, 1
        %s237 = scalar_select %p236, %s17, 1
        %s238 = smul.addr %s237, 8
        %s239 = scalar_lea.vmem %s1, %s238
        %p240 = scmp.lt.s32.totalorder %s17, 1
        %s241 = scalar_select %p240, %s17, 1
        %s242 = smul.addr %s241, 8
        %s243 = scalar_lea.vmem %s4, %s242
        %v244 = vld [vmem:[%s235] sm:$0xff]
        %v245 = vlaneseq
        %v246 = vand.u32 %v245, 127
        %v247 = vadd.s32 %v246, 128
        %v248 = vadd.s32 %v246, 256
        %v249 = vadd.s32 %v246, 384
        %250 = vset.pattern.permute.xlu0 0
        %251 = vperm.xlu0 %250, %v244
        %v252 = vpop.permute.xlu0 %251
        %vm253 = vcmp.eq.s32.totalorder %v252, %v246
        %vm254 = vcmp.eq.s32.totalorder %v252, %v247
        %vm255 = vcmp.eq.s32.totalorder %v252, %v248
        %vm256 = vcmp.eq.s32.totalorder %v252, %v249
        %v257 = vsel %vm253, 1, 0
        %v258 = vsel %vm254, 1, 0
        %v259 = vsel %vm255, 1, 0
        %v260 = vsel %vm256, 1, 0
        %v261 = vcvt.s32.f32 %v257
        %v262 = vcvt.s32.f32 %v258
        %v263 = vcvt.s32.f32 %v259
        %v264 = vcvt.s32.f32 %v260
        %v265 = vpack.c.bf16 %v262, %v261
        %v266 = vpack.c.bf16 %v264, %v263
        %267 = vset.pattern.permute.xlu0 1
        %268 = vperm.xlu0 %267, %v244
        %v269 = vpop.permute.xlu0 %268
        %vm270 = vcmp.eq.s32.totalorder %v269, %v246
        %vm271 = vcmp.eq.s32.totalorder %v269, %v247
        %vm272 = vcmp.eq.s32.totalorder %v269, %v248
        %vm273 = vcmp.eq.s32.totalorder %v269, %v249
        %v274 = vsel %vm270, 1, 0
        %v275 = vsel %vm271, 1, 0
        %v276 = vsel %vm272, 1, 0
        %v277 = vsel %vm273, 1, 0
        %v278 = vcvt.s32.f32 %v274
        %v279 = vcvt.s32.f32 %v275
        %v280 = vcvt.s32.f32 %v276
        %v281 = vcvt.s32.f32 %v277
        %v282 = vpack.c.bf16 %v279, %v278
        %v283 = vpack.c.bf16 %v281, %v280
        %284 = vset.pattern.permute.xlu0 2
        %285 = vperm.xlu0 %284, %v244
        %v286 = vpop.permute.xlu0 %285
        %vm287 = vcmp.eq.s32.totalorder %v286, %v246
        %v288 = vsel %vm287, 1, 0
        %v289 = vcvt.s32.f32 %v288
        %v290 = vpack.c.bf16 %v289, %v289
        %291 = vset.pattern.permute.xlu0 3
        %292 = vperm.xlu0 %291, %v244
        %v293 = vpop.permute.xlu0 %292
        %vm294 = vcmp.eq.s32.totalorder %v293, %v246
        %v295 = vsel %vm294, 1, 0
        %v296 = vcvt.s32.f32 %v295
        %v297 = vpack.c.bf16 %v296, %v296
        %v300 = vunpack.c.l.b16 %v265
        %v301 = vunpack.c.h.b16 %v265
        %v302 = vunpack.c.l.b16 %v266
        %v303 = vunpack.c.h.b16 %v266
        %v304 = vpack.c.b16 %v300, %v300
        %v305 = vpack.c.b16 %v301, %v301
        %v306 = vpack.c.b16 %v302, %v302
        %v307 = vpack.c.b16 %v303, %v303
        %v314 = vunpack.c.l.b16 %v282
        %v315 = vunpack.c.h.b16 %v282
        %v316 = vunpack.c.l.b16 %v283
        %v317 = vunpack.c.h.b16 %v283
        %v318 = vpack.c.b16 %v314, %v314
        %v319 = vpack.c.b16 %v315, %v315
        %v320 = vpack.c.b16 %v316, %v316
        %v321 = vpack.c.b16 %v317, %v317
        %v326 = vld [vmem:[#allocation2] sm:$0xf]
        %v327 = vld [vmem:[#allocation2 + $0x4] sm:$0xf]
        %v328 = vld [vmem:[#allocation2 + $0x8] sm:$0xf]
        %v329 = vld [vmem:[#allocation2 + $0xc] sm:$0xf]
        %v330 = vld [vmem:[#allocation2 + $0x10] sm:$0xf]
        %v331 = vld [vmem:[#allocation2 + $0x14] sm:$0xf]
        %v332 = vld [vmem:[#allocation2 + $0x18] sm:$0xf]
        %v333 = vld [vmem:[#allocation2 + $0x1c] sm:$0xf]
        %v334 = vld [vmem:[#allocation2 + $0x20] sm:$0xf]
        %v335 = vld [vmem:[#allocation2 + $0x24] sm:$0xf]
        %v336 = vld [vmem:[#allocation2 + $0x28] sm:$0xf]
        %v337 = vld [vmem:[#allocation2 + $0x2c] sm:$0xf]
        %v338 = vld [vmem:[#allocation2 + $0x30] sm:$0xf]
        %v339 = vld [vmem:[#allocation2 + $0x34] sm:$0xf]
        %v340 = vld [vmem:[#allocation2 + $0x38] sm:$0xf]
        %v341 = vld [vmem:[#allocation2 + $0x3c] sm:$0xf]
        %v342 = vld [vmem:[#allocation2 + $0x40] sm:$0xf]
        %v343 = vld [vmem:[#allocation2 + $0x44] sm:$0xf]
        %v344 = vld [vmem:[#allocation2 + $0x48] sm:$0xf]
        %v345 = vld [vmem:[#allocation2 + $0x4c] sm:$0xf]
        %v346 = vld [vmem:[#allocation2 + $0x50] sm:$0xf]
        %v347 = vld [vmem:[#allocation2 + $0x54] sm:$0xf]
        %v348 = vld [vmem:[#allocation2 + $0x58] sm:$0xf]
        %v349 = vld [vmem:[#allocation2 + $0x5c] sm:$0xf]
        %v350 = vld [vmem:[#allocation2 + $0x60] sm:$0xf]
        %v351 = vld [vmem:[#allocation2 + $0x64] sm:$0xf]
        %v352 = vld [vmem:[#allocation2 + $0x68] sm:$0xf]
        %v353 = vld [vmem:[#allocation2 + $0x6c] sm:$0xf]
        %v354 = vld [vmem:[#allocation2 + $0x70] sm:$0xf]
        %v355 = vld [vmem:[#allocation2 + $0x74] sm:$0xf]
        %v356 = vld [vmem:[#allocation2 + $0x78] sm:$0xf]
        %v357 = vld [vmem:[#allocation2 + $0x7c] sm:$0xf]
        %v358 = vld [vmem:[#allocation2 + $0x80] sm:$0xf]
        %v359 = vld [vmem:[#allocation2 + $0x84] sm:$0xf]
        %v360 = vld [vmem:[#allocation2 + $0x88] sm:$0xf]
        %v361 = vld [vmem:[#allocation2 + $0x8c] sm:$0xf]
        %v362 = vld [vmem:[#allocation2 + $0x90] sm:$0xf]
        %v363 = vld [vmem:[#allocation2 + $0x94] sm:$0xf]
        %v364 = vld [vmem:[#allocation2 + $0x98] sm:$0xf]
        %v365 = vld [vmem:[#allocation2 + $0x9c] sm:$0xf]
        %v366 = vld [vmem:[#allocation2 + $0xa0] sm:$0xf]
        %v367 = vld [vmem:[#allocation2 + $0xa4] sm:$0xf]
        %v368 = vld [vmem:[#allocation2 + $0xa8] sm:$0xf]
        %v369 = vld [vmem:[#allocation2 + $0xac] sm:$0xf]
        %v370 = vld [vmem:[#allocation2 + $0xb0] sm:$0xf]
        %v371 = vld [vmem:[#allocation2 + $0xb4] sm:$0xf]
        %v372 = vld [vmem:[#allocation2 + $0xb8] sm:$0xf]
        %v373 = vld [vmem:[#allocation2 + $0xbc] sm:$0xf]
        %v374 = vld [vmem:[#allocation2 + $0xc0] sm:$0xf]
        %v375 = vld [vmem:[#allocation2 + $0xc4] sm:$0xf]
        %v376 = vld [vmem:[#allocation2 + $0xc8] sm:$0xf]
        %v377 = vld [vmem:[#allocation2 + $0xcc] sm:$0xf]
        %v378 = vld [vmem:[#allocation2 + $0xd0] sm:$0xf]
        %v379 = vld [vmem:[#allocation2 + $0xd4] sm:$0xf]
        %v380 = vld [vmem:[#allocation2 + $0xd8] sm:$0xf]
        %v381 = vld [vmem:[#allocation2 + $0xdc] sm:$0xf]
        %v382 = vld [vmem:[#allocation2 + $0xe0] sm:$0xf]
        %v383 = vld [vmem:[#allocation2 + $0xe4] sm:$0xf]
        %v384 = vld [vmem:[#allocation2 + $0xe8] sm:$0xf]
        %v385 = vld [vmem:[#allocation2 + $0xec] sm:$0xf]
        %v386 = vld [vmem:[#allocation2 + $0xf0] sm:$0xf]
        %v387 = vld [vmem:[#allocation2 + $0xf4] sm:$0xf]
        %v388 = vld [vmem:[#allocation2 + $0xf8] sm:$0xf]
        %v389 = vld [vmem:[#allocation2 + $0xfc] sm:$0xf]
        %v390 = vld [vmem:[#allocation2 + $0x100] sm:$0xf]
        %v391 = vld [vmem:[#allocation2 + $0x104] sm:$0xf]
        %v392 = vld [vmem:[#allocation2 + $0x108] sm:$0xf]
        %v393 = vld [vmem:[#allocation2 + $0x10c] sm:$0xf]
        %v394 = vld [vmem:[#allocation2 + $0x110] sm:$0xf]
        %v395 = vld [vmem:[#allocation2 + $0x114] sm:$0xf]
        %v396 = vld [vmem:[#allocation2 + $0x118] sm:$0xf]
        %v397 = vld [vmem:[#allocation2 + $0x11c] sm:$0xf]
        %v398 = vld [vmem:[#allocation2 + $0x120] sm:$0xf]
        %v399 = vld [vmem:[#allocation2 + $0x124] sm:$0xf]
        %v400 = vld [vmem:[#allocation2 + $0x128] sm:$0xf]
        %v401 = vld [vmem:[#allocation2 + $0x12c] sm:$0xf]
        %v402 = vld [vmem:[#allocation2 + $0x130] sm:$0xf]
        %v403 = vld [vmem:[#allocation2 + $0x134] sm:$0xf]
        %v404 = vld [vmem:[#allocation2 + $0x138] sm:$0xf]
        %v405 = vld [vmem:[#allocation2 + $0x13c] sm:$0xf]
        %v406 = vld [vmem:[#allocation2 + $0x140] sm:$0xf]
        %v407 = vld [vmem:[#allocation2 + $0x144] sm:$0xf]
        %v408 = vld [vmem:[#allocation2 + $0x148] sm:$0xf]
        %v409 = vld [vmem:[#allocation2 + $0x14c] sm:$0xf]
        %v410 = vld [vmem:[#allocation2 + $0x150] sm:$0xf]
        %v411 = vld [vmem:[#allocation2 + $0x154] sm:$0xf]
        %v412 = vld [vmem:[#allocation2 + $0x158] sm:$0xf]
        %v413 = vld [vmem:[#allocation2 + $0x15c] sm:$0xf]
        %v414 = vld [vmem:[#allocation2 + $0x160] sm:$0xf]
        %v415 = vld [vmem:[#allocation2 + $0x164] sm:$0xf]
        %v416 = vld [vmem:[#allocation2 + $0x168] sm:$0xf]
        %v417 = vld [vmem:[#allocation2 + $0x16c] sm:$0xf]
        %v418 = vld [vmem:[#allocation2 + $0x170] sm:$0xf]
        %v419 = vld [vmem:[#allocation2 + $0x174] sm:$0xf]
        %v420 = vld [vmem:[#allocation2 + $0x178] sm:$0xf]
        %v421 = vld [vmem:[#allocation2 + $0x17c] sm:$0xf]
        %v422 = vld [vmem:[#allocation2 + $0x180] sm:$0xf]
        %v423 = vld [vmem:[#allocation2 + $0x184] sm:$0xf]
        %v424 = vld [vmem:[#allocation2 + $0x188] sm:$0xf]
        %v425 = vld [vmem:[#allocation2 + $0x18c] sm:$0xf]
        %v426 = vld [vmem:[#allocation2 + $0x190] sm:$0xf]
        %v427 = vld [vmem:[#allocation2 + $0x194] sm:$0xf]
        %v428 = vld [vmem:[#allocation2 + $0x198] sm:$0xf]
        %v429 = vld [vmem:[#allocation2 + $0x19c] sm:$0xf]
        %v430 = vld [vmem:[#allocation2 + $0x1a0] sm:$0xf]
        %v431 = vld [vmem:[#allocation2 + $0x1a4] sm:$0xf]
        %v432 = vld [vmem:[#allocation2 + $0x1a8] sm:$0xf]
        %v433 = vld [vmem:[#allocation2 + $0x1ac] sm:$0xf]
        %v434 = vld [vmem:[#allocation2 + $0x1b0] sm:$0xf]
        %v435 = vld [vmem:[#allocation2 + $0x1b4] sm:$0xf]
        %v436 = vld [vmem:[#allocation2 + $0x1b8] sm:$0xf]
        %v437 = vld [vmem:[#allocation2 + $0x1bc] sm:$0xf]
        %v438 = vld [vmem:[#allocation2 + $0x1c0] sm:$0xf]
        %v439 = vld [vmem:[#allocation2 + $0x1c4] sm:$0xf]
        %v440 = vld [vmem:[#allocation2 + $0x1c8] sm:$0xf]
        %v441 = vld [vmem:[#allocation2 + $0x1cc] sm:$0xf]
        %v442 = vld [vmem:[#allocation2 + $0x1d0] sm:$0xf]
        %v443 = vld [vmem:[#allocation2 + $0x1d4] sm:$0xf]
        %v444 = vld [vmem:[#allocation2 + $0x1d8] sm:$0xf]
        %v445 = vld [vmem:[#allocation2 + $0x1dc] sm:$0xf]
        %v446 = vld [vmem:[#allocation2 + $0x1e0] sm:$0xf]
        %v447 = vld [vmem:[#allocation2 + $0x1e4] sm:$0xf]
        %v448 = vld [vmem:[#allocation2 + $0x1e8] sm:$0xf]
        %v449 = vld [vmem:[#allocation2 + $0x1ec] sm:$0xf]
        %v450 = vld [vmem:[#allocation2 + $0x1f0] sm:$0xf]
        %v451 = vld [vmem:[#allocation2 + $0x1f4] sm:$0xf]
        %v452 = vld [vmem:[#allocation2 + $0x1f8] sm:$0xf]
        %v453 = vld [vmem:[#allocation2 + $0x1fc] sm:$0xf]
        %v454 = vld [vmem:[#allocation2 + $0x200] sm:$0xf]
        %v455 = vld [vmem:[#allocation2 + $0x204] sm:$0xf]
        %v456 = vld [vmem:[#allocation2 + $0x208] sm:$0xf]
        %v457 = vld [vmem:[#allocation2 + $0x20c] sm:$0xf]
        %v458 = vld [vmem:[#allocation2 + $0x210] sm:$0xf]
        %v459 = vld [vmem:[#allocation2 + $0x214] sm:$0xf]
        %v460 = vld [vmem:[#allocation2 + $0x218] sm:$0xf]
        %v461 = vld [vmem:[#allocation2 + $0x21c] sm:$0xf]
        %v462 = vld [vmem:[#allocation2 + $0x220] sm:$0xf]
        %v463 = vld [vmem:[#allocation2 + $0x224] sm:$0xf]
        %v464 = vld [vmem:[#allocation2 + $0x228] sm:$0xf]
        %v465 = vld [vmem:[#allocation2 + $0x22c] sm:$0xf]
        %v466 = vld [vmem:[#allocation2 + $0x230] sm:$0xf]
        %v467 = vld [vmem:[#allocation2 + $0x234] sm:$0xf]
        %v468 = vld [vmem:[#allocation2 + $0x238] sm:$0xf]
        %v469 = vld [vmem:[#allocation2 + $0x23c] sm:$0xf]
        %v470 = vld [vmem:[#allocation2 + $0x240] sm:$0xf]
        %v471 = vld [vmem:[#allocation2 + $0x244] sm:$0xf]
        %v472 = vld [vmem:[#allocation2 + $0x248] sm:$0xf]
        %v473 = vld [vmem:[#allocation2 + $0x24c] sm:$0xf]
        %v474 = vld [vmem:[#allocation2 + $0x250] sm:$0xf]
        %v475 = vld [vmem:[#allocation2 + $0x254] sm:$0xf]
        %v476 = vld [vmem:[#allocation2 + $0x258] sm:$0xf]
        %v477 = vld [vmem:[#allocation2 + $0x25c] sm:$0xf]
        %v478 = vld [vmem:[#allocation2 + $0x260] sm:$0xf]
        %v479 = vld [vmem:[#allocation2 + $0x264] sm:$0xf]
        %v480 = vld [vmem:[#allocation2 + $0x268] sm:$0xf]
        %v481 = vld [vmem:[#allocation2 + $0x26c] sm:$0xf]
        %v482 = vld [vmem:[#allocation2 + $0x270] sm:$0xf]
        %v483 = vld [vmem:[#allocation2 + $0x274] sm:$0xf]
        %v484 = vld [vmem:[#allocation2 + $0x278] sm:$0xf]
        %v485 = vld [vmem:[#allocation2 + $0x27c] sm:$0xf]
        %v486 = vld [vmem:[#allocation4] sm:$0xf]
        %v487 = vld [vmem:[#allocation4 + $0x4] sm:$0xf]
        %v488 = vld [vmem:[#allocation4 + $0x8] sm:$0xf]
        %v489 = vld [vmem:[#allocation4 + $0xc] sm:$0xf]
        %v490 = vld [vmem:[#allocation4 + $0x10] sm:$0xf]
        %v491 = vld [vmem:[#allocation4 + $0x14] sm:$0xf]
        %v492 = vld [vmem:[#allocation4 + $0x18] sm:$0xf]
        %v493 = vld [vmem:[#allocation4 + $0x1c] sm:$0xf]
        %v494 = vld [vmem:[#allocation4 + $0x20] sm:$0xf]
        %v495 = vld [vmem:[#allocation4 + $0x24] sm:$0xf]
        %v496 = vld [vmem:[#allocation4 + $0x28] sm:$0xf]
        %v497 = vld [vmem:[#allocation4 + $0x2c] sm:$0xf]
        %v498 = vld [vmem:[#allocation4 + $0x30] sm:$0xf]
        %v499 = vld [vmem:[#allocation4 + $0x34] sm:$0xf]
        %v500 = vld [vmem:[#allocation4 + $0x38] sm:$0xf]
        %v501 = vld [vmem:[#allocation4 + $0x3c] sm:$0xf]
        %v502 = vld [vmem:[#allocation4 + $0x40] sm:$0xf]
        %v503 = vld [vmem:[#allocation4 + $0x44] sm:$0xf]
        %v504 = vld [vmem:[#allocation4 + $0x48] sm:$0xf]
        %v505 = vld [vmem:[#allocation4 + $0x4c] sm:$0xf]
        %v506 = vld [vmem:[#allocation4 + $0x50] sm:$0xf]
        %v507 = vld [vmem:[#allocation4 + $0x54] sm:$0xf]
        %v508 = vld [vmem:[#allocation4 + $0x58] sm:$0xf]
        %v509 = vld [vmem:[#allocation4 + $0x5c] sm:$0xf]
        %v510 = vld [vmem:[#allocation4 + $0x60] sm:$0xf]
        %v511 = vld [vmem:[#allocation4 + $0x64] sm:$0xf]
        %v512 = vld [vmem:[#allocation4 + $0x68] sm:$0xf]
        %v513 = vld [vmem:[#allocation4 + $0x6c] sm:$0xf]
        %v514 = vld [vmem:[#allocation4 + $0x70] sm:$0xf]
        %v515 = vld [vmem:[#allocation4 + $0x74] sm:$0xf]
        %v516 = vld [vmem:[#allocation4 + $0x78] sm:$0xf]
        %v517 = vld [vmem:[#allocation4 + $0x7c] sm:$0xf]
        %v518 = vld [vmem:[#allocation4 + $0x80] sm:$0xf]
        %v519 = vld [vmem:[#allocation4 + $0x84] sm:$0xf]
        %v520 = vld [vmem:[#allocation4 + $0x88] sm:$0xf]
        %v521 = vld [vmem:[#allocation4 + $0x8c] sm:$0xf]
        %v522 = vld [vmem:[#allocation4 + $0x90] sm:$0xf]
        %v523 = vld [vmem:[#allocation4 + $0x94] sm:$0xf]
        %v524 = vld [vmem:[#allocation4 + $0x98] sm:$0xf]
        %v525 = vld [vmem:[#allocation4 + $0x9c] sm:$0xf]
        %v526 = vld [vmem:[#allocation4 + $0xa0] sm:$0xf]
        %v527 = vld [vmem:[#allocation4 + $0xa4] sm:$0xf]
        %v528 = vld [vmem:[#allocation4 + $0xa8] sm:$0xf]
        %v529 = vld [vmem:[#allocation4 + $0xac] sm:$0xf]
        %v530 = vld [vmem:[#allocation4 + $0xb0] sm:$0xf]
        %v531 = vld [vmem:[#allocation4 + $0xb4] sm:$0xf]
        %v532 = vld [vmem:[#allocation4 + $0xb8] sm:$0xf]
        %v533 = vld [vmem:[#allocation4 + $0xbc] sm:$0xf]
        %v534 = vld [vmem:[#allocation4 + $0xc0] sm:$0xf]
        %v535 = vld [vmem:[#allocation4 + $0xc4] sm:$0xf]
        %v536 = vld [vmem:[#allocation4 + $0xc8] sm:$0xf]
        %v537 = vld [vmem:[#allocation4 + $0xcc] sm:$0xf]
        %v538 = vld [vmem:[#allocation4 + $0xd0] sm:$0xf]
        %v539 = vld [vmem:[#allocation4 + $0xd4] sm:$0xf]
        %v540 = vld [vmem:[#allocation4 + $0xd8] sm:$0xf]
        %v541 = vld [vmem:[#allocation4 + $0xdc] sm:$0xf]
        %v542 = vld [vmem:[#allocation4 + $0xe0] sm:$0xf]
        %v543 = vld [vmem:[#allocation4 + $0xe4] sm:$0xf]
        %v544 = vld [vmem:[#allocation4 + $0xe8] sm:$0xf]
        %v545 = vld [vmem:[#allocation4 + $0xec] sm:$0xf]
        %v546 = vld [vmem:[#allocation4 + $0xf0] sm:$0xf]
        %v547 = vld [vmem:[#allocation4 + $0xf4] sm:$0xf]
        %v548 = vld [vmem:[#allocation4 + $0xf8] sm:$0xf]
        %v549 = vld [vmem:[#allocation4 + $0xfc] sm:$0xf]
        %v550 = vld [vmem:[#allocation4 + $0x100] sm:$0xf]
        %v551 = vld [vmem:[#allocation4 + $0x104] sm:$0xf]
        %v552 = vld [vmem:[#allocation4 + $0x108] sm:$0xf]
        %v553 = vld [vmem:[#allocation4 + $0x10c] sm:$0xf]
        %v554 = vld [vmem:[#allocation4 + $0x110] sm:$0xf]
        %v555 = vld [vmem:[#allocation4 + $0x114] sm:$0xf]
        %v556 = vld [vmem:[#allocation4 + $0x118] sm:$0xf]
        %v557 = vld [vmem:[#allocation4 + $0x11c] sm:$0xf]
        %v558 = vld [vmem:[#allocation4 + $0x120] sm:$0xf]
        %v559 = vld [vmem:[#allocation4 + $0x124] sm:$0xf]
        %v560 = vld [vmem:[#allocation4 + $0x128] sm:$0xf]
        %v561 = vld [vmem:[#allocation4 + $0x12c] sm:$0xf]
        %v562 = vld [vmem:[#allocation4 + $0x130] sm:$0xf]
        %v563 = vld [vmem:[#allocation4 + $0x134] sm:$0xf]
        %v564 = vld [vmem:[#allocation4 + $0x138] sm:$0xf]
        %v565 = vld [vmem:[#allocation4 + $0x13c] sm:$0xf]
        %v566 = vld [vmem:[#allocation4 + $0x140] sm:$0xf]
        %v567 = vld [vmem:[#allocation4 + $0x144] sm:$0xf]
        %v568 = vld [vmem:[#allocation4 + $0x148] sm:$0xf]
        %v569 = vld [vmem:[#allocation4 + $0x14c] sm:$0xf]
        %v570 = vld [vmem:[#allocation4 + $0x150] sm:$0xf]
        %v571 = vld [vmem:[#allocation4 + $0x154] sm:$0xf]
        %v572 = vld [vmem:[#allocation4 + $0x158] sm:$0xf]
        %v573 = vld [vmem:[#allocation4 + $0x15c] sm:$0xf]
        %v574 = vld [vmem:[#allocation4 + $0x160] sm:$0xf]
        %v575 = vld [vmem:[#allocation4 + $0x164] sm:$0xf]
        %v576 = vld [vmem:[#allocation4 + $0x168] sm:$0xf]
        %v577 = vld [vmem:[#allocation4 + $0x16c] sm:$0xf]
        %v578 = vld [vmem:[#allocation4 + $0x170] sm:$0xf]
        %v579 = vld [vmem:[#allocation4 + $0x174] sm:$0xf]
        %v580 = vld [vmem:[#allocation4 + $0x178] sm:$0xf]
        %v581 = vld [vmem:[#allocation4 + $0x17c] sm:$0xf]
        %v582 = vld [vmem:[#allocation4 + $0x180] sm:$0xf]
        %v583 = vld [vmem:[#allocation4 + $0x184] sm:$0xf]
        %v584 = vld [vmem:[#allocation4 + $0x188] sm:$0xf]
        %v585 = vld [vmem:[#allocation4 + $0x18c] sm:$0xf]
        %v586 = vld [vmem:[#allocation4 + $0x190] sm:$0xf]
        %v587 = vld [vmem:[#allocation4 + $0x194] sm:$0xf]
        %v588 = vld [vmem:[#allocation4 + $0x198] sm:$0xf]
        %v589 = vld [vmem:[#allocation4 + $0x19c] sm:$0xf]
        %v590 = vld [vmem:[#allocation4 + $0x1a0] sm:$0xf]
        %v591 = vld [vmem:[#allocation4 + $0x1a4] sm:$0xf]
        %v592 = vld [vmem:[#allocation4 + $0x1a8] sm:$0xf]
        %v593 = vld [vmem:[#allocation4 + $0x1ac] sm:$0xf]
        %v594 = vld [vmem:[#allocation4 + $0x1b0] sm:$0xf]
        %v595 = vld [vmem:[#allocation4 + $0x1b4] sm:$0xf]
        %v596 = vld [vmem:[#allocation4 + $0x1b8] sm:$0xf]
        %v597 = vld [vmem:[#allocation4 + $0x1bc] sm:$0xf]
        %v598 = vld [vmem:[#allocation4 + $0x1c0] sm:$0xf]
        %v599 = vld [vmem:[#allocation4 + $0x1c4] sm:$0xf]
        %v600 = vld [vmem:[#allocation4 + $0x1c8] sm:$0xf]
        %v601 = vld [vmem:[#allocation4 + $0x1cc] sm:$0xf]
        %v602 = vld [vmem:[#allocation4 + $0x1d0] sm:$0xf]
        %v603 = vld [vmem:[#allocation4 + $0x1d4] sm:$0xf]
        %v604 = vld [vmem:[#allocation4 + $0x1d8] sm:$0xf]
        %v605 = vld [vmem:[#allocation4 + $0x1dc] sm:$0xf]
        %v606 = vld [vmem:[#allocation4 + $0x1e0] sm:$0xf]
        %v607 = vld [vmem:[#allocation4 + $0x1e4] sm:$0xf]
        %v608 = vld [vmem:[#allocation4 + $0x1e8] sm:$0xf]
        %v609 = vld [vmem:[#allocation4 + $0x1ec] sm:$0xf]
        %v610 = vld [vmem:[#allocation4 + $0x1f0] sm:$0xf]
        %v611 = vld [vmem:[#allocation4 + $0x1f4] sm:$0xf]
        %v612 = vld [vmem:[#allocation4 + $0x1f8] sm:$0xf]
        %v613 = vld [vmem:[#allocation4 + $0x1fc] sm:$0xf]
        %v614 = vld [vmem:[#allocation4 + $0x200] sm:$0xf]
        %v615 = vld [vmem:[#allocation4 + $0x204] sm:$0xf]
        %v616 = vld [vmem:[#allocation4 + $0x208] sm:$0xf]
        %v617 = vld [vmem:[#allocation4 + $0x20c] sm:$0xf]
        %v618 = vld [vmem:[#allocation4 + $0x210] sm:$0xf]
        %v619 = vld [vmem:[#allocation4 + $0x214] sm:$0xf]
        %v620 = vld [vmem:[#allocation4 + $0x218] sm:$0xf]
        %v621 = vld [vmem:[#allocation4 + $0x21c] sm:$0xf]
        %v622 = vld [vmem:[#allocation4 + $0x220] sm:$0xf]
        %v623 = vld [vmem:[#allocation4 + $0x224] sm:$0xf]
        %v624 = vld [vmem:[#allocation4 + $0x228] sm:$0xf]
        %v625 = vld [vmem:[#allocation4 + $0x22c] sm:$0xf]
        %v626 = vld [vmem:[#allocation4 + $0x230] sm:$0xf]
        %v627 = vld [vmem:[#allocation4 + $0x234] sm:$0xf]
        %v628 = vld [vmem:[#allocation4 + $0x238] sm:$0xf]
        %v629 = vld [vmem:[#allocation4 + $0x23c] sm:$0xf]
        %v630 = vld [vmem:[#allocation4 + $0x240] sm:$0xf]
        %v631 = vld [vmem:[#allocation4 + $0x244] sm:$0xf]
        %v632 = vld [vmem:[#allocation4 + $0x248] sm:$0xf]
        %v633 = vld [vmem:[#allocation4 + $0x24c] sm:$0xf]
        %v634 = vld [vmem:[#allocation4 + $0x250] sm:$0xf]
        %v635 = vld [vmem:[#allocation4 + $0x254] sm:$0xf]
        %v636 = vld [vmem:[#allocation4 + $0x258] sm:$0xf]
        %v637 = vld [vmem:[#allocation4 + $0x25c] sm:$0xf]
        %v638 = vld [vmem:[#allocation4 + $0x260] sm:$0xf]
        %v639 = vld [vmem:[#allocation4 + $0x264] sm:$0xf]
        %v640 = vld [vmem:[#allocation4 + $0x268] sm:$0xf]
        %v641 = vld [vmem:[#allocation4 + $0x26c] sm:$0xf]
        %v642 = vld [vmem:[#allocation4 + $0x270] sm:$0xf]
        %v643 = vld [vmem:[#allocation4 + $0x274] sm:$0xf]
        %v644 = vld [vmem:[#allocation4 + $0x278] sm:$0xf]
        %v645 = vld [vmem:[#allocation4 + $0x27c] sm:$0xf]
        %v806 = vunpack.c.l.b16 %v486
        %v807 = vunpack.c.l.b16 %v487
        %v808 = vunpack.c.l.b16 %v488
        %v809 = vunpack.c.l.b16 %v489
        %v810 = vunpack.c.l.b16 %v490
        %v811 = vunpack.c.l.b16 %v491
        %v812 = vunpack.c.l.b16 %v492
        %v813 = vunpack.c.l.b16 %v493
        %v814 = vunpack.c.l.b16 %v494
        %v815 = vunpack.c.l.b16 %v495
        %v816 = vunpack.c.l.b16 %v496
        %v817 = vunpack.c.l.b16 %v497
        %v818 = vunpack.c.l.b16 %v498
        %v819 = vunpack.c.l.b16 %v499
        %v820 = vunpack.c.l.b16 %v500
        %v821 = vunpack.c.l.b16 %v501
        %v822 = vunpack.c.l.b16 %v502
        %v823 = vunpack.c.l.b16 %v503
        %v824 = vunpack.c.l.b16 %v504
        %v825 = vunpack.c.l.b16 %v505
        %v826 = vunpack.c.l.b16 %v506
        %v827 = vunpack.c.l.b16 %v507
        %v828 = vunpack.c.l.b16 %v508
        %v829 = vunpack.c.l.b16 %v509
        %v830 = vunpack.c.l.b16 %v510
        %v831 = vunpack.c.l.b16 %v511
        %v832 = vunpack.c.l.b16 %v512
        %v833 = vunpack.c.l.b16 %v513
        %v834 = vunpack.c.l.b16 %v514
        %v835 = vunpack.c.l.b16 %v515
        %v836 = vunpack.c.l.b16 %v516
        %v837 = vunpack.c.l.b16 %v517
        %v838 = vunpack.c.l.b16 %v518
        %v839 = vunpack.c.l.b16 %v519
        %v840 = vunpack.c.l.b16 %v520
        %v841 = vunpack.c.l.b16 %v521
        %v842 = vunpack.c.l.b16 %v522
        %v843 = vunpack.c.l.b16 %v523
        %v844 = vunpack.c.l.b16 %v524
        %v845 = vunpack.c.l.b16 %v525
        %v846 = vunpack.c.l.b16 %v526
        %v847 = vunpack.c.l.b16 %v527
        %v848 = vunpack.c.l.b16 %v528
        %v849 = vunpack.c.l.b16 %v529
        %v850 = vunpack.c.l.b16 %v530
        %v851 = vunpack.c.l.b16 %v531
        %v852 = vunpack.c.l.b16 %v532
        %v853 = vunpack.c.l.b16 %v533
        %v854 = vunpack.c.l.b16 %v534
        %v855 = vunpack.c.l.b16 %v535
        %v856 = vunpack.c.l.b16 %v536
        %v857 = vunpack.c.l.b16 %v537
        %v858 = vunpack.c.l.b16 %v538
        %v859 = vunpack.c.l.b16 %v539
        %v860 = vunpack.c.l.b16 %v540
        %v861 = vunpack.c.l.b16 %v541
        %v862 = vunpack.c.l.b16 %v542
        %v863 = vunpack.c.l.b16 %v543
        %v864 = vunpack.c.l.b16 %v544
        %v865 = vunpack.c.l.b16 %v545
        %v866 = vunpack.c.l.b16 %v546
        %v867 = vunpack.c.l.b16 %v547
        %v868 = vunpack.c.l.b16 %v548
        %v869 = vunpack.c.l.b16 %v549
        %v870 = vunpack.c.l.b16 %v550
        %v871 = vunpack.c.l.b16 %v551
        %v872 = vunpack.c.l.b16 %v552
        %v873 = vunpack.c.l.b16 %v553
        %v874 = vunpack.c.l.b16 %v554
        %v875 = vunpack.c.l.b16 %v555
        %v876 = vunpack.c.l.b16 %v556
        %v877 = vunpack.c.l.b16 %v557
        %v878 = vunpack.c.l.b16 %v558
        %v879 = vunpack.c.l.b16 %v559
        %v880 = vunpack.c.l.b16 %v560
        %v881 = vunpack.c.l.b16 %v561
        %v882 = vunpack.c.l.b16 %v562
        %v883 = vunpack.c.l.b16 %v563
        %v884 = vunpack.c.l.b16 %v564
        %v885 = vunpack.c.l.b16 %v565
        %v886 = vunpack.c.l.b16 %v566
        %v887 = vunpack.c.l.b16 %v567
        %v888 = vunpack.c.l.b16 %v568
        %v889 = vunpack.c.l.b16 %v569
        %v890 = vunpack.c.l.b16 %v570
        %v891 = vunpack.c.l.b16 %v571
        %v892 = vunpack.c.l.b16 %v572
        %v893 = vunpack.c.l.b16 %v573
        %v894 = vunpack.c.l.b16 %v574
        %v895 = vunpack.c.l.b16 %v575
        %v896 = vunpack.c.l.b16 %v576
        %v897 = vunpack.c.l.b16 %v577
        %v898 = vunpack.c.l.b16 %v578
        %v899 = vunpack.c.l.b16 %v579
        %v900 = vunpack.c.l.b16 %v580
        %v901 = vunpack.c.l.b16 %v581
        %v902 = vunpack.c.l.b16 %v582
        %v903 = vunpack.c.l.b16 %v583
        %v904 = vunpack.c.l.b16 %v584
        %v905 = vunpack.c.l.b16 %v585
        %v906 = vunpack.c.l.b16 %v586
        %v907 = vunpack.c.l.b16 %v587
        %v908 = vunpack.c.l.b16 %v588
        %v909 = vunpack.c.l.b16 %v589
        %v910 = vunpack.c.l.b16 %v590
        %v911 = vunpack.c.l.b16 %v591
        %v912 = vunpack.c.l.b16 %v592
        %v913 = vunpack.c.l.b16 %v593
        %v914 = vunpack.c.l.b16 %v594
        %v915 = vunpack.c.l.b16 %v595
        %v916 = vunpack.c.l.b16 %v596
        %v917 = vunpack.c.l.b16 %v597
        %v918 = vunpack.c.l.b16 %v598
        %v919 = vunpack.c.l.b16 %v599
        %v920 = vunpack.c.l.b16 %v600
        %v921 = vunpack.c.l.b16 %v601
        %v922 = vunpack.c.l.b16 %v602
        %v923 = vunpack.c.l.b16 %v603
        %v924 = vunpack.c.l.b16 %v604
        %v925 = vunpack.c.l.b16 %v605
        %v926 = vunpack.c.l.b16 %v606
        %v927 = vunpack.c.l.b16 %v607
        %v928 = vunpack.c.l.b16 %v608
        %v929 = vunpack.c.l.b16 %v609
        %v930 = vunpack.c.l.b16 %v610
        %v931 = vunpack.c.l.b16 %v611
        %v932 = vunpack.c.l.b16 %v612
        %v933 = vunpack.c.l.b16 %v613
        %v934 = vunpack.c.l.b16 %v614
        %v935 = vunpack.c.l.b16 %v615
        %v936 = vunpack.c.l.b16 %v616
        %v937 = vunpack.c.l.b16 %v617
        %v938 = vunpack.c.l.b16 %v618
        %v939 = vunpack.c.l.b16 %v619
        %v940 = vunpack.c.l.b16 %v620
        %v941 = vunpack.c.l.b16 %v621
        %v942 = vunpack.c.l.b16 %v622
        %v943 = vunpack.c.l.b16 %v623
        %v944 = vunpack.c.l.b16 %v624
        %v945 = vunpack.c.l.b16 %v625
        %v946 = vunpack.c.l.b16 %v626
        %v947 = vunpack.c.l.b16 %v627
        %v948 = vunpack.c.l.b16 %v628
        %v949 = vunpack.c.l.b16 %v629
        %v950 = vunpack.c.l.b16 %v630
        %v951 = vunpack.c.l.b16 %v631
        %v952 = vunpack.c.l.b16 %v632
        %v953 = vunpack.c.l.b16 %v633
        %v954 = vunpack.c.l.b16 %v634
        %v955 = vunpack.c.l.b16 %v635
        %v956 = vunpack.c.l.b16 %v636
        %v957 = vunpack.c.l.b16 %v637
        %v958 = vunpack.c.l.b16 %v638
        %v959 = vunpack.c.l.b16 %v639
        %v960 = vunpack.c.l.b16 %v640
        %v961 = vunpack.c.l.b16 %v641
        %v962 = vunpack.c.l.b16 %v642
        %v963 = vunpack.c.l.b16 %v643
        %v964 = vunpack.c.l.b16 %v644
        %v965 = vunpack.c.l.b16 %v645
        %v966 = vpack.c.b16 %v807, %v806
        %v967 = vpack.c.b16 %v809, %v808
        %v968 = vpack.c.b16 %v811, %v810
        %v969 = vpack.c.b16 %v813, %v812
        %v970 = vpack.c.b16 %v815, %v814
        %v971 = vpack.c.b16 %v817, %v816
        %v972 = vpack.c.b16 %v819, %v818
        %v973 = vpack.c.b16 %v821, %v820
        %v974 = vpack.c.b16 %v823, %v822
        %v975 = vpack.c.b16 %v825, %v824
        %v976 = vpack.c.b16 %v827, %v826
        %v977 = vpack.c.b16 %v829, %v828
        %v978 = vpack.c.b16 %v831, %v830
        %v979 = vpack.c.b16 %v833, %v832
        %v980 = vpack.c.b16 %v835, %v834
        %v981 = vpack.c.b16 %v837, %v836
        %v982 = vpack.c.b16 %v839, %v838
        %v983 = vpack.c.b16 %v841, %v840
        %v984 = vpack.c.b16 %v843, %v842
        %v985 = vpack.c.b16 %v845, %v844
        %v986 = vpack.c.b16 %v847, %v846
        %v987 = vpack.c.b16 %v849, %v848
        %v988 = vpack.c.b16 %v851, %v850
        %v989 = vpack.c.b16 %v853, %v852
        %v990 = vpack.c.b16 %v855, %v854
        %v991 = vpack.c.b16 %v857, %v856
        %v992 = vpack.c.b16 %v859, %v858
        %v993 = vpack.c.b16 %v861, %v860
        %v994 = vpack.c.b16 %v863, %v862
        %v995 = vpack.c.b16 %v865, %v864
        %v996 = vpack.c.b16 %v867, %v866
        %v997 = vpack.c.b16 %v869, %v868
        %v998 = vpack.c.b16 %v871, %v870
        %v999 = vpack.c.b16 %v873, %v872
        %v1000 = vpack.c.b16 %v875, %v874
        %v1001 = vpack.c.b16 %v877, %v876
        %v1002 = vpack.c.b16 %v879, %v878
        %v1003 = vpack.c.b16 %v881, %v880
        %v1004 = vpack.c.b16 %v883, %v882
        %v1005 = vpack.c.b16 %v885, %v884
        %v1006 = vpack.c.b16 %v887, %v886
        %v1007 = vpack.c.b16 %v889, %v888
        %v1008 = vpack.c.b16 %v891, %v890
        %v1009 = vpack.c.b16 %v893, %v892
        %v1010 = vpack.c.b16 %v895, %v894
        %v1011 = vpack.c.b16 %v897, %v896
        %v1012 = vpack.c.b16 %v899, %v898
        %v1013 = vpack.c.b16 %v901, %v900
        %v1014 = vpack.c.b16 %v903, %v902
        %v1015 = vpack.c.b16 %v905, %v904
        %v1016 = vpack.c.b16 %v907, %v906
        %v1017 = vpack.c.b16 %v909, %v908
        %v1018 = vpack.c.b16 %v911, %v910
        %v1019 = vpack.c.b16 %v913, %v912
        %v1020 = vpack.c.b16 %v915, %v914
        %v1021 = vpack.c.b16 %v917, %v916
        %v1022 = vpack.c.b16 %v919, %v918
        %v1023 = vpack.c.b16 %v921, %v920
        %v1024 = vpack.c.b16 %v923, %v922
        %v1025 = vpack.c.b16 %v925, %v924
        %v1026 = vpack.c.b16 %v927, %v926
        %v1027 = vpack.c.b16 %v929, %v928
        %v1028 = vpack.c.b16 %v931, %v930
        %v1029 = vpack.c.b16 %v933, %v932
        %v1030 = vpack.c.b16 %v935, %v934
        %v1031 = vpack.c.b16 %v937, %v936
        %v1032 = vpack.c.b16 %v939, %v938
        %v1033 = vpack.c.b16 %v941, %v940
        %v1034 = vpack.c.b16 %v943, %v942
        %v1035 = vpack.c.b16 %v945, %v944
        %v1036 = vpack.c.b16 %v947, %v946
        %v1037 = vpack.c.b16 %v949, %v948
        %v1038 = vpack.c.b16 %v951, %v950
        %v1039 = vpack.c.b16 %v953, %v952
        %v1040 = vpack.c.b16 %v955, %v954
        %v1041 = vpack.c.b16 %v957, %v956
        %v1042 = vpack.c.b16 %v959, %v958
        %v1043 = vpack.c.b16 %v961, %v960
        %v1044 = vpack.c.b16 %v963, %v962
        %v1045 = vpack.c.b16 %v965, %v964
        %1126 = vmatpush.bf16.msra.mxu0 %v973
        %1127 = vmatpush.bf16.msra.mxu0 %v972
        %1128 = vmatpush.bf16.msra.mxu0 %v971
        %1129 = vmatpush.bf16.msra.mxu0 %v970
        %1130 = vmatpush.bf16.msra.mxu0 %v969
        %1131 = vmatpush.bf16.msra.mxu0 %v968
        %1132 = vmatpush.bf16.msra.mxu0 %v967
        %1133 = vmatpush.bf16.msra.mxu0 %v966
        %1134 = vmatmul.bf16.gmra.mxu0 %v304
        %v1135 = vpop.f32.mrf.mxu0
        %v1136 = vadd.f32 0.0, %v1135
        %v1137 = vpop.f32.mrf.mxu0
        %1138 = vdwg.mxu0
        %1139 = vmatpush.bf16.msra.mxu0 %v981
        %1140 = vmatpush.bf16.msra.mxu0 %v980
        %1141 = vmatpush.bf16.msra.mxu0 %v979
        %1142 = vmatpush.bf16.msra.mxu0 %v978
        %1143 = vmatpush.bf16.msra.mxu0 %v977
        %1144 = vmatpush.bf16.msra.mxu0 %v976
        %1145 = vmatpush.bf16.msra.mxu0 %v975
        %1146 = vmatpush.bf16.msra.mxu0 %v974
        %1147 = vmatmul.bf16.gmra.mxu0 %v305
        %v1148 = vpop.f32.mrf.mxu0
        %v1149 = vadd.f32 %v1136, %v1148
        %v1150 = vpop.f32.mrf.mxu0
        %1151 = vdwg.mxu0
        %1152 = vmatpush.bf16.msra.mxu0 %v989
        %1153 = vmatpush.bf16.msra.mxu0 %v988
        %1154 = vmatpush.bf16.msra.mxu0 %v987
        %1155 = vmatpush.bf16.msra.mxu0 %v986
        %1156 = vmatpush.bf16.msra.mxu0 %v985
        %1157 = vmatpush.bf16.msra.mxu0 %v984
        %1158 = vmatpush.bf16.msra.mxu0 %v983
        %1159 = vmatpush.bf16.msra.mxu0 %v982
        %1160 = vmatmul.bf16.gmra.mxu0 %v306
        %v1161 = vpop.f32.mrf.mxu0
        %v1162 = vadd.f32 %v1149, %v1161
        %v1163 = vpop.f32.mrf.mxu0
        %1164 = vdwg.mxu0
        %1165 = vmatpush.bf16.msra.mxu0 %v997
        %1166 = vmatpush.bf16.msra.mxu0 %v996
        %1167 = vmatpush.bf16.msra.mxu0 %v995
        %1168 = vmatpush.bf16.msra.mxu0 %v994
        %1169 = vmatpush.bf16.msra.mxu0 %v993
        %1170 = vmatpush.bf16.msra.mxu0 %v992
        %1171 = vmatpush.bf16.msra.mxu0 %v991
        %1172 = vmatpush.bf16.msra.mxu0 %v990
        %1173 = vmatmul.bf16.gmra.mxu0 %v307
        %v1174 = vpop.f32.mrf.mxu0
        %v1175 = vadd.f32 %v1162, %v1174
        %v1176 = vpop.f32.mrf.mxu0
        %1177 = vdwg.mxu0
        %1178 = vmatpush.bf16.msra.mxu0 %v1005
        %1179 = vmatpush.bf16.msra.mxu0 %v1004
        %1180 = vmatpush.bf16.msra.mxu0 %v1003
        %1181 = vmatpush.bf16.msra.mxu0 %v1002
        %1182 = vmatpush.bf16.msra.mxu0 %v1001
        %1183 = vmatpush.bf16.msra.mxu0 %v1000
        %1184 = vmatpush.bf16.msra.mxu0 %v999
        %1185 = vmatpush.bf16.msra.mxu0 %v998
        %1186 = vmatmul.bf16.gmra.mxu0 %v318
        %v1187 = vpop.f32.mrf.mxu0
        %v1188 = vadd.f32 %v1175, %v1187
        %v1189 = vpop.f32.mrf.mxu0
        %1190 = vdwg.mxu0
        %1191 = vmatpush.bf16.msra.mxu0 %v1013
        %1192 = vmatpush.bf16.msra.mxu0 %v1012
        %1193 = vmatpush.bf16.msra.mxu0 %v1011
        %1194 = vmatpush.bf16.msra.mxu0 %v1010
        %1195 = vmatpush.bf16.msra.mxu0 %v1009
        %1196 = vmatpush.bf16.msra.mxu0 %v1008
        %1197 = vmatpush.bf16.msra.mxu0 %v1007
        %1198 = vmatpush.bf16.msra.mxu0 %v1006
        %1199 = vmatmul.bf16.gmra.mxu0 %v319
        %v1200 = vpop.f32.mrf.mxu0
        %v1201 = vadd.f32 %v1188, %v1200
        %v1202 = vpop.f32.mrf.mxu0
        %1203 = vdwg.mxu0
        %1204 = vmatpush.bf16.msra.mxu0 %v1021
        %1205 = vmatpush.bf16.msra.mxu0 %v1020
        %1206 = vmatpush.bf16.msra.mxu0 %v1019
        %1207 = vmatpush.bf16.msra.mxu0 %v1018
        %1208 = vmatpush.bf16.msra.mxu0 %v1017
        %1209 = vmatpush.bf16.msra.mxu0 %v1016
        %1210 = vmatpush.bf16.msra.mxu0 %v1015
        %1211 = vmatpush.bf16.msra.mxu0 %v1014
        %1212 = vmatmul.bf16.gmra.mxu0 %v320
        %v1213 = vpop.f32.mrf.mxu0
        %v1214 = vadd.f32 %v1201, %v1213
        %v1215 = vpop.f32.mrf.mxu0
        %1216 = vdwg.mxu0
        %1217 = vmatpush.bf16.msra.mxu0 %v1029
        %1218 = vmatpush.bf16.msra.mxu0 %v1028
        %1219 = vmatpush.bf16.msra.mxu0 %v1027
        %1220 = vmatpush.bf16.msra.mxu0 %v1026
        %1221 = vmatpush.bf16.msra.mxu0 %v1025
        %1222 = vmatpush.bf16.msra.mxu0 %v1024
        %1223 = vmatpush.bf16.msra.mxu0 %v1023
        %1224 = vmatpush.bf16.msra.mxu0 %v1022
        %1225 = vmatmul.bf16.gmra.mxu0 %v321
        %v1226 = vpop.f32.mrf.mxu0
        %v1227 = vadd.f32 %v1214, %v1226
        %v1228 = vpop.f32.mrf.mxu0
        %1229 = vdwg.mxu0
        %1230 = vmatpush.bf16.msra.mxu0 %v1037
        %1231 = vmatpush.bf16.msra.mxu0 %v1036
        %1232 = vmatpush.bf16.msra.mxu0 %v1035
        %1233 = vmatpush.bf16.msra.mxu0 %v1034
        %1234 = vmatpush.bf16.msra.mxu0 %v1033
        %1235 = vmatpush.bf16.msra.mxu0 %v1032
        %1236 = vmatpush.bf16.msra.mxu0 %v1031
        %1237 = vmatpush.bf16.msra.mxu0 %v1030
        %1238 = vmatmul.bf16.gmra.mxu0 %v290
        %v1239 = vpop.f32.mrf.mxu0
        %v1240 = vadd.f32 %v1227, %v1239
        %v1241 = vpop.f32.mrf.mxu0
        %1242 = vdwg.mxu0
        %1243 = vmatpush.bf16.msra.mxu0 %v1045
        %1244 = vmatpush.bf16.msra.mxu0 %v1044
        %1245 = vmatpush.bf16.msra.mxu0 %v1043
        %1246 = vmatpush.bf16.msra.mxu0 %v1042
        %1247 = vmatpush.bf16.msra.mxu0 %v1041
        %1248 = vmatpush.bf16.msra.mxu0 %v1040
        %1249 = vmatpush.bf16.msra.mxu0 %v1039
        %1250 = vmatpush.bf16.msra.mxu0 %v1038
        %1251 = vmatmul.bf16.gmra.mxu0 %v297
        %v1252 = vpop.f32.mrf.mxu0
        %v1253 = vadd.f32 %v1240, %v1252
        %v1254 = vpop.f32.mrf.mxu0
        %1255 = vdwg.mxu0
        %v1416 = vunpack.c.l.b16 %v326
        %v1417 = vunpack.c.l.b16 %v327
        %v1418 = vunpack.c.l.b16 %v328
        %v1419 = vunpack.c.l.b16 %v329
        %v1420 = vunpack.c.l.b16 %v330
        %v1421 = vunpack.c.l.b16 %v331
        %v1422 = vunpack.c.l.b16 %v332
        %v1423 = vunpack.c.l.b16 %v333
        %v1424 = vunpack.c.l.b16 %v334
        %v1425 = vunpack.c.l.b16 %v335
        %v1426 = vunpack.c.l.b16 %v336
        %v1427 = vunpack.c.l.b16 %v337
        %v1428 = vunpack.c.l.b16 %v338
        %v1429 = vunpack.c.l.b16 %v339
        %v1430 = vunpack.c.l.b16 %v340
        %v1431 = vunpack.c.l.b16 %v341
        %v1432 = vunpack.c.l.b16 %v342
        %v1433 = vunpack.c.l.b16 %v343
        %v1434 = vunpack.c.l.b16 %v344
        %v1435 = vunpack.c.l.b16 %v345
        %v1436 = vunpack.c.l.b16 %v346
        %v1437 = vunpack.c.l.b16 %v347
        %v1438 = vunpack.c.l.b16 %v348
        %v1439 = vunpack.c.l.b16 %v349
        %v1440 = vunpack.c.l.b16 %v350
        %v1441 = vunpack.c.l.b16 %v351
        %v1442 = vunpack.c.l.b16 %v352
        %v1443 = vunpack.c.l.b16 %v353
        %v1444 = vunpack.c.l.b16 %v354
        %v1445 = vunpack.c.l.b16 %v355
        %v1446 = vunpack.c.l.b16 %v356
        %v1447 = vunpack.c.l.b16 %v357
        %v1448 = vunpack.c.l.b16 %v358
        %v1449 = vunpack.c.l.b16 %v359
        %v1450 = vunpack.c.l.b16 %v360
        %v1451 = vunpack.c.l.b16 %v361
        %v1452 = vunpack.c.l.b16 %v362
        %v1453 = vunpack.c.l.b16 %v363
        %v1454 = vunpack.c.l.b16 %v364
        %v1455 = vunpack.c.l.b16 %v365
        %v1456 = vunpack.c.l.b16 %v366
        %v1457 = vunpack.c.l.b16 %v367
        %v1458 = vunpack.c.l.b16 %v368
        %v1459 = vunpack.c.l.b16 %v369
        %v1460 = vunpack.c.l.b16 %v370
        %v1461 = vunpack.c.l.b16 %v371
        %v1462 = vunpack.c.l.b16 %v372
        %v1463 = vunpack.c.l.b16 %v373
        %v1464 = vunpack.c.l.b16 %v374
        %v1465 = vunpack.c.l.b16 %v375
        %v1466 = vunpack.c.l.b16 %v376
        %v1467 = vunpack.c.l.b16 %v377
        %v1468 = vunpack.c.l.b16 %v378
        %v1469 = vunpack.c.l.b16 %v379
        %v1470 = vunpack.c.l.b16 %v380
        %v1471 = vunpack.c.l.b16 %v381
        %v1472 = vunpack.c.l.b16 %v382
        %v1473 = vunpack.c.l.b16 %v383
        %v1474 = vunpack.c.l.b16 %v384
        %v1475 = vunpack.c.l.b16 %v385
        %v1476 = vunpack.c.l.b16 %v386
        %v1477 = vunpack.c.l.b16 %v387
        %v1478 = vunpack.c.l.b16 %v388
        %v1479 = vunpack.c.l.b16 %v389
        %v1480 = vunpack.c.l.b16 %v390
        %v1481 = vunpack.c.l.b16 %v391
        %v1482 = vunpack.c.l.b16 %v392
        %v1483 = vunpack.c.l.b16 %v393
        %v1484 = vunpack.c.l.b16 %v394
        %v1485 = vunpack.c.l.b16 %v395
        %v1486 = vunpack.c.l.b16 %v396
        %v1487 = vunpack.c.l.b16 %v397
        %v1488 = vunpack.c.l.b16 %v398
        %v1489 = vunpack.c.l.b16 %v399
        %v1490 = vunpack.c.l.b16 %v400
        %v1491 = vunpack.c.l.b16 %v401
        %v1492 = vunpack.c.l.b16 %v402
        %v1493 = vunpack.c.l.b16 %v403
        %v1494 = vunpack.c.l.b16 %v404
        %v1495 = vunpack.c.l.b16 %v405
        %v1496 = vunpack.c.l.b16 %v406
        %v1497 = vunpack.c.l.b16 %v407
        %v1498 = vunpack.c.l.b16 %v408
        %v1499 = vunpack.c.l.b16 %v409
        %v1500 = vunpack.c.l.b16 %v410
        %v1501 = vunpack.c.l.b16 %v411
        %v1502 = vunpack.c.l.b16 %v412
        %v1503 = vunpack.c.l.b16 %v413
        %v1504 = vunpack.c.l.b16 %v414
        %v1505 = vunpack.c.l.b16 %v415
        %v1506 = vunpack.c.l.b16 %v416
        %v1507 = vunpack.c.l.b16 %v417
        %v1508 = vunpack.c.l.b16 %v418
        %v1509 = vunpack.c.l.b16 %v419
        %v1510 = vunpack.c.l.b16 %v420
        %v1511 = vunpack.c.l.b16 %v421
        %v1512 = vunpack.c.l.b16 %v422
        %v1513 = vunpack.c.l.b16 %v423
        %v1514 = vunpack.c.l.b16 %v424
        %v1515 = vunpack.c.l.b16 %v425
        %v1516 = vunpack.c.l.b16 %v426
        %v1517 = vunpack.c.l.b16 %v427
        %v1518 = vunpack.c.l.b16 %v428
        %v1519 = vunpack.c.l.b16 %v429
        %v1520 = vunpack.c.l.b16 %v430
        %v1521 = vunpack.c.l.b16 %v431
        %v1522 = vunpack.c.l.b16 %v432
        %v1523 = vunpack.c.l.b16 %v433
        %v1524 = vunpack.c.l.b16 %v434
        %v1525 = vunpack.c.l.b16 %v435
        %v1526 = vunpack.c.l.b16 %v436
        %v1527 = vunpack.c.l.b16 %v437
        %v1528 = vunpack.c.l.b16 %v438
        %v1529 = vunpack.c.l.b16 %v439
        %v1530 = vunpack.c.l.b16 %v440
        %v1531 = vunpack.c.l.b16 %v441
        %v1532 = vunpack.c.l.b16 %v442
        %v1533 = vunpack.c.l.b16 %v443
        %v1534 = vunpack.c.l.b16 %v444
        %v1535 = vunpack.c.l.b16 %v445
        %v1536 = vunpack.c.l.b16 %v446
        %v1537 = vunpack.c.l.b16 %v447
        %v1538 = vunpack.c.l.b16 %v448
        %v1539 = vunpack.c.l.b16 %v449
        %v1540 = vunpack.c.l.b16 %v450
        %v1541 = vunpack.c.l.b16 %v451
        %v1542 = vunpack.c.l.b16 %v452
        %v1543 = vunpack.c.l.b16 %v453
        %v1544 = vunpack.c.l.b16 %v454
        %v1545 = vunpack.c.l.b16 %v455
        %v1546 = vunpack.c.l.b16 %v456
        %v1547 = vunpack.c.l.b16 %v457
        %v1548 = vunpack.c.l.b16 %v458
        %v1549 = vunpack.c.l.b16 %v459
        %v1550 = vunpack.c.l.b16 %v460
        %v1551 = vunpack.c.l.b16 %v461
        %v1552 = vunpack.c.l.b16 %v462
        %v1553 = vunpack.c.l.b16 %v463
        %v1554 = vunpack.c.l.b16 %v464
        %v1555 = vunpack.c.l.b16 %v465
        %v1556 = vunpack.c.l.b16 %v466
        %v1557 = vunpack.c.l.b16 %v467
        %v1558 = vunpack.c.l.b16 %v468
        %v1559 = vunpack.c.l.b16 %v469
        %v1560 = vunpack.c.l.b16 %v470
        %v1561 = vunpack.c.l.b16 %v471
        %v1562 = vunpack.c.l.b16 %v472
        %v1563 = vunpack.c.l.b16 %v473
        %v1564 = vunpack.c.l.b16 %v474
        %v1565 = vunpack.c.l.b16 %v475
        %v1566 = vunpack.c.l.b16 %v476
        %v1567 = vunpack.c.l.b16 %v477
        %v1568 = vunpack.c.l.b16 %v478
        %v1569 = vunpack.c.l.b16 %v479
        %v1570 = vunpack.c.l.b16 %v480
        %v1571 = vunpack.c.l.b16 %v481
        %v1572 = vunpack.c.l.b16 %v482
        %v1573 = vunpack.c.l.b16 %v483
        %v1574 = vunpack.c.l.b16 %v484
        %v1575 = vunpack.c.l.b16 %v485
        %v1576 = vpack.c.b16 %v1417, %v1416
        %v1577 = vpack.c.b16 %v1419, %v1418
        %v1578 = vpack.c.b16 %v1421, %v1420
        %v1579 = vpack.c.b16 %v1423, %v1422
        %v1580 = vpack.c.b16 %v1425, %v1424
        %v1581 = vpack.c.b16 %v1427, %v1426
        %v1582 = vpack.c.b16 %v1429, %v1428
        %v1583 = vpack.c.b16 %v1431, %v1430
        %v1584 = vpack.c.b16 %v1433, %v1432
        %v1585 = vpack.c.b16 %v1435, %v1434
        %v1586 = vpack.c.b16 %v1437, %v1436
        %v1587 = vpack.c.b16 %v1439, %v1438
        %v1588 = vpack.c.b16 %v1441, %v1440
        %v1589 = vpack.c.b16 %v1443, %v1442
        %v1590 = vpack.c.b16 %v1445, %v1444
        %v1591 = vpack.c.b16 %v1447, %v1446
        %v1592 = vpack.c.b16 %v1449, %v1448
        %v1593 = vpack.c.b16 %v1451, %v1450
        %v1594 = vpack.c.b16 %v1453, %v1452
        %v1595 = vpack.c.b16 %v1455, %v1454
        %v1596 = vpack.c.b16 %v1457, %v1456
        %v1597 = vpack.c.b16 %v1459, %v1458
        %v1598 = vpack.c.b16 %v1461, %v1460
        %v1599 = vpack.c.b16 %v1463, %v1462
        %v1600 = vpack.c.b16 %v1465, %v1464
        %v1601 = vpack.c.b16 %v1467, %v1466
        %v1602 = vpack.c.b16 %v1469, %v1468
        %v1603 = vpack.c.b16 %v1471, %v1470
        %v1604 = vpack.c.b16 %v1473, %v1472
        %v1605 = vpack.c.b16 %v1475, %v1474
        %v1606 = vpack.c.b16 %v1477, %v1476
        %v1607 = vpack.c.b16 %v1479, %v1478
        %v1608 = vpack.c.b16 %v1481, %v1480
        %v1609 = vpack.c.b16 %v1483, %v1482
        %v1610 = vpack.c.b16 %v1485, %v1484
        %v1611 = vpack.c.b16 %v1487, %v1486
        %v1612 = vpack.c.b16 %v1489, %v1488
        %v1613 = vpack.c.b16 %v1491, %v1490
        %v1614 = vpack.c.b16 %v1493, %v1492
        %v1615 = vpack.c.b16 %v1495, %v1494
        %v1616 = vpack.c.b16 %v1497, %v1496
        %v1617 = vpack.c.b16 %v1499, %v1498
        %v1618 = vpack.c.b16 %v1501, %v1500
        %v1619 = vpack.c.b16 %v1503, %v1502
        %v1620 = vpack.c.b16 %v1505, %v1504
        %v1621 = vpack.c.b16 %v1507, %v1506
        %v1622 = vpack.c.b16 %v1509, %v1508
        %v1623 = vpack.c.b16 %v1511, %v1510
        %v1624 = vpack.c.b16 %v1513, %v1512
        %v1625 = vpack.c.b16 %v1515, %v1514
        %v1626 = vpack.c.b16 %v1517, %v1516
        %v1627 = vpack.c.b16 %v1519, %v1518
        %v1628 = vpack.c.b16 %v1521, %v1520
        %v1629 = vpack.c.b16 %v1523, %v1522
        %v1630 = vpack.c.b16 %v1525, %v1524
        %v1631 = vpack.c.b16 %v1527, %v1526
        %v1632 = vpack.c.b16 %v1529, %v1528
        %v1633 = vpack.c.b16 %v1531, %v1530
        %v1634 = vpack.c.b16 %v1533, %v1532
        %v1635 = vpack.c.b16 %v1535, %v1534
        %v1636 = vpack.c.b16 %v1537, %v1536
        %v1637 = vpack.c.b16 %v1539, %v1538
        %v1638 = vpack.c.b16 %v1541, %v1540
        %v1639 = vpack.c.b16 %v1543, %v1542
        %v1640 = vpack.c.b16 %v1545, %v1544
        %v1641 = vpack.c.b16 %v1547, %v1546
        %v1642 = vpack.c.b16 %v1549, %v1548
        %v1643 = vpack.c.b16 %v1551, %v1550
        %v1644 = vpack.c.b16 %v1553, %v1552
        %v1645 = vpack.c.b16 %v1555, %v1554
        %v1646 = vpack.c.b16 %v1557, %v1556
        %v1647 = vpack.c.b16 %v1559, %v1558
        %v1648 = vpack.c.b16 %v1561, %v1560
        %v1649 = vpack.c.b16 %v1563, %v1562
        %v1650 = vpack.c.b16 %v1565, %v1564
        %v1651 = vpack.c.b16 %v1567, %v1566
        %v1652 = vpack.c.b16 %v1569, %v1568
        %v1653 = vpack.c.b16 %v1571, %v1570
        %v1654 = vpack.c.b16 %v1573, %v1572
        %v1655 = vpack.c.b16 %v1575, %v1574
        %1736 = vmatpush.bf16.msra.mxu0 %v1583
        %1737 = vmatpush.bf16.msra.mxu0 %v1582
        %1738 = vmatpush.bf16.msra.mxu0 %v1581
        %1739 = vmatpush.bf16.msra.mxu0 %v1580
        %1740 = vmatpush.bf16.msra.mxu0 %v1579
        %1741 = vmatpush.bf16.msra.mxu0 %v1578
        %1742 = vmatpush.bf16.msra.mxu0 %v1577
        %1743 = vmatpush.bf16.msra.mxu0 %v1576
        %1744 = vmatmul.bf16.gmra.mxu0 %v304
        %v1745 = vpop.f32.mrf.mxu0
        %v1746 = vadd.f32 %v1253, %v1745
        %v1747 = vpop.f32.mrf.mxu0
        %1748 = vdwg.mxu0
        %1749 = vmatpush.bf16.msra.mxu0 %v1591
        %1750 = vmatpush.bf16.msra.mxu0 %v1590
        %1751 = vmatpush.bf16.msra.mxu0 %v1589
        %1752 = vmatpush.bf16.msra.mxu0 %v1588
        %1753 = vmatpush.bf16.msra.mxu0 %v1587
        %1754 = vmatpush.bf16.msra.mxu0 %v1586
        %1755 = vmatpush.bf16.msra.mxu0 %v1585
        %1756 = vmatpush.bf16.msra.mxu0 %v1584
        %1757 = vmatmul.bf16.gmra.mxu0 %v305
        %v1758 = vpop.f32.mrf.mxu0
        %v1759 = vadd.f32 %v1746, %v1758
        %v1760 = vpop.f32.mrf.mxu0
        %1761 = vdwg.mxu0
        %1762 = vmatpush.bf16.msra.mxu0 %v1599
        %1763 = vmatpush.bf16.msra.mxu0 %v1598
        %1764 = vmatpush.bf16.msra.mxu0 %v1597
        %1765 = vmatpush.bf16.msra.mxu0 %v1596
        %1766 = vmatpush.bf16.msra.mxu0 %v1595
        %1767 = vmatpush.bf16.msra.mxu0 %v1594
        %1768 = vmatpush.bf16.msra.mxu0 %v1593
        %1769 = vmatpush.bf16.msra.mxu0 %v1592
        %1770 = vmatmul.bf16.gmra.mxu0 %v306
        %v1771 = vpop.f32.mrf.mxu0
        %v1772 = vadd.f32 %v1759, %v1771
        %v1773 = vpop.f32.mrf.mxu0
        %1774 = vdwg.mxu0
        %1775 = vmatpush.bf16.msra.mxu0 %v1607
        %1776 = vmatpush.bf16.msra.mxu0 %v1606
        %1777 = vmatpush.bf16.msra.mxu0 %v1605
        %1778 = vmatpush.bf16.msra.mxu0 %v1604
        %1779 = vmatpush.bf16.msra.mxu0 %v1603
        %1780 = vmatpush.bf16.msra.mxu0 %v1602
        %1781 = vmatpush.bf16.msra.mxu0 %v1601
        %1782 = vmatpush.bf16.msra.mxu0 %v1600
        %1783 = vmatmul.bf16.gmra.mxu0 %v307
        %v1784 = vpop.f32.mrf.mxu0
        %v1785 = vadd.f32 %v1772, %v1784
        %v1786 = vpop.f32.mrf.mxu0
        %1787 = vdwg.mxu0
        %1788 = vmatpush.bf16.msra.mxu0 %v1615
        %1789 = vmatpush.bf16.msra.mxu0 %v1614
        %1790 = vmatpush.bf16.msra.mxu0 %v1613
        %1791 = vmatpush.bf16.msra.mxu0 %v1612
        %1792 = vmatpush.bf16.msra.mxu0 %v1611
        %1793 = vmatpush.bf16.msra.mxu0 %v1610
        %1794 = vmatpush.bf16.msra.mxu0 %v1609
        %1795 = vmatpush.bf16.msra.mxu0 %v1608
        %1796 = vmatmul.bf16.gmra.mxu0 %v318
        %v1797 = vpop.f32.mrf.mxu0
        %v1798 = vadd.f32 %v1785, %v1797
        %v1799 = vpop.f32.mrf.mxu0
        %1800 = vdwg.mxu0
        %1801 = vmatpush.bf16.msra.mxu0 %v1623
        %1802 = vmatpush.bf16.msra.mxu0 %v1622
        %1803 = vmatpush.bf16.msra.mxu0 %v1621
        %1804 = vmatpush.bf16.msra.mxu0 %v1620
        %1805 = vmatpush.bf16.msra.mxu0 %v1619
        %1806 = vmatpush.bf16.msra.mxu0 %v1618
        %1807 = vmatpush.bf16.msra.mxu0 %v1617
        %1808 = vmatpush.bf16.msra.mxu0 %v1616
        %1809 = vmatmul.bf16.gmra.mxu0 %v319
        %v1810 = vpop.f32.mrf.mxu0
        %v1811 = vadd.f32 %v1798, %v1810
        %v1812 = vpop.f32.mrf.mxu0
        %1813 = vdwg.mxu0
        %1814 = vmatpush.bf16.msra.mxu0 %v1631
        %1815 = vmatpush.bf16.msra.mxu0 %v1630
        %1816 = vmatpush.bf16.msra.mxu0 %v1629
        %1817 = vmatpush.bf16.msra.mxu0 %v1628
        %1818 = vmatpush.bf16.msra.mxu0 %v1627
        %1819 = vmatpush.bf16.msra.mxu0 %v1626
        %1820 = vmatpush.bf16.msra.mxu0 %v1625
        %1821 = vmatpush.bf16.msra.mxu0 %v1624
        %1822 = vmatmul.bf16.gmra.mxu0 %v320
        %v1823 = vpop.f32.mrf.mxu0
        %v1824 = vadd.f32 %v1811, %v1823
        %v1825 = vpop.f32.mrf.mxu0
        %1826 = vdwg.mxu0
        %1827 = vmatpush.bf16.msra.mxu0 %v1639
        %1828 = vmatpush.bf16.msra.mxu0 %v1638
        %1829 = vmatpush.bf16.msra.mxu0 %v1637
        %1830 = vmatpush.bf16.msra.mxu0 %v1636
        %1831 = vmatpush.bf16.msra.mxu0 %v1635
        %1832 = vmatpush.bf16.msra.mxu0 %v1634
        %1833 = vmatpush.bf16.msra.mxu0 %v1633
        %1834 = vmatpush.bf16.msra.mxu0 %v1632
        %1835 = vmatmul.bf16.gmra.mxu0 %v321
        %v1836 = vpop.f32.mrf.mxu0
        %v1837 = vadd.f32 %v1824, %v1836
        %v1838 = vpop.f32.mrf.mxu0
        %1839 = vdwg.mxu0
        %1840 = vmatpush.bf16.msra.mxu0 %v1647
        %1841 = vmatpush.bf16.msra.mxu0 %v1646
        %1842 = vmatpush.bf16.msra.mxu0 %v1645
        %1843 = vmatpush.bf16.msra.mxu0 %v1644
        %1844 = vmatpush.bf16.msra.mxu0 %v1643
        %1845 = vmatpush.bf16.msra.mxu0 %v1642
        %1846 = vmatpush.bf16.msra.mxu0 %v1641
        %1847 = vmatpush.bf16.msra.mxu0 %v1640
        %1848 = vmatmul.bf16.gmra.mxu0 %v290
        %v1849 = vpop.f32.mrf.mxu0
        %v1850 = vadd.f32 %v1837, %v1849
        %v1851 = vpop.f32.mrf.mxu0
        %1852 = vdwg.mxu0
        %1853 = vmatpush.bf16.msra.mxu0 %v1655
        %1854 = vmatpush.bf16.msra.mxu0 %v1654
        %1855 = vmatpush.bf16.msra.mxu0 %v1653
        %1856 = vmatpush.bf16.msra.mxu0 %v1652
        %1857 = vmatpush.bf16.msra.mxu0 %v1651
        %1858 = vmatpush.bf16.msra.mxu0 %v1650
        %1859 = vmatpush.bf16.msra.mxu0 %v1649
        %1860 = vmatpush.bf16.msra.mxu0 %v1648
        %1861 = vmatmul.bf16.gmra.mxu0 %v297
        %v1862 = vpop.f32.mrf.mxu0
        %v1863 = vadd.f32 %v1850, %v1862
        %v1864 = vpop.f32.mrf.mxu0
        %1865 = vdwg.mxu0
        %v1866 = vld [vmem:[%s239] sm:$0xff]
        %v1867 = vadd.f32 %v1866, %v1863
        %vm1868 = vcmask 261120
        %1869 = vst.msk [vmem:[%s243] sm:$0xff] %vm1868, %v1867
        %p1870 = scmp.lt.s32.totalorder %s17, 1
        %s1871 = scalar_select %p1870, %s17, 1
        %s1872 = smul.addr %s1871, 8
        %s1873 = scalar_lea.vmem %s4, %s1872
        // Predicated region
        $region45: #{forward.1} parent=35 // pred_check
          %p1874 = pneg %p129
        $region46: #{forward.1} parent=35 // pred_check_branch
          %1876 = sbr.rel (%p1874) target = $region48
        $region47: #{forward.1} parent=35 // pred_region
          _
        $region48: #{forward.1} parent=35 // pred_fallthru
          _
      $region36: #{forward.1} parent=5 // pred_fallthru
        _
      %p1877 = scmp.le.s32.totalorder 2, %s12
      // Predicated region
      $region49: #{forward.1} parent=5 // pred_check
        %p1878 = pneg %p1877
      $region50: #{forward.1} parent=5 // pred_check_branch
        %1880 = sbr.rel (%p1878) target = $region52
      $region51: #{forward.1} parent=5 // pred_region
        %s1881 = ssub.s32 %s12, 2
        // Predicated region
        $region53: #{forward.1} parent=51 // pred_check
          %p1882 = pneg %p135
        $region54: #{forward.1} parent=51 // pred_check_branch
          %1884 = sbr.rel (%p1882) target = $region56
        $region55: #{forward.1} parent=51 // pred_region
          %p1885 = scmp.lt.s32.totalorder %s18, 1
          %s1886 = scalar_select %p1885, %s18, 1
          %s1887 = smul.addr %s1886, 8
          %s1888 = scalar_lea.vmem %s4, %s1887
        $region56: #{forward.1} parent=51 // pred_fallthru
          _
      $region52: #{forward.1} parent=5 // pred_fallthru
        _
    $region6: #{forward.1} parent=1 // loop_footer
      %s16 = sadd.s32 1, %s12
    $region7: #{forward.1} parent=1 // loop_footer_branch
      %11 = sbr.rel target = $region3
    $region8: #{forward.1} parent=1 // loop_exit
      _
    %1889 = vsyncpa [#allocation3], 1
    %s1890 = scalar_lea.sflag [#allocation3], 1
    %1891 = vsyncpa %s1890, 1
    %1892 = vsyncpa [#allocation5], 1

</llo_original>
